<compile_context>
chip_gen: v6e
topology: v6e:2x2x1
jax: 0.10.0
libtpu: 0.0.40
codegen_flags: <defaults>
</compile_context>

<pallas_src>
import functools

import jax
import jax.numpy as jnp
import numpy as np
from jax.experimental import pallas as pl
from jax.experimental.pallas import tpu as pltpu


# --------------------------------------------------------------------------
# Pallas kernel: the full pred_steps recurrence for one batch element.
# --------------------------------------------------------------------------
def _decoder_kernel(
    x_ref,             # (1, A, D)       initial node features (t = 0)
    rt_ref,            # (1, E, 1)       rel_type[:, :, 1:2] gate
    rel_sr_ref,        # (2E, A)         [rel_send; rel_rec] stacked
    rel_rec_t_ref,     # (A, E)          rel_rec^T
    w1_ref, b1_ref,    # msg_fc1:  (2D, H1), (1, H1)
    w2_ref, b2_ref,    # msg_fc2:  (H1, MO), (1, MO)
    wo1_ref, bo1_ref,  # out_fc1:  (D+MO, NH), (1, NH)
    wo2_ref, bo2_ref,  # out_fc2:  (NH, NH),   (1, NH)
    wo3_ref, bo3_ref,  # out_fc3:  (NH, D),    (1, D)
    out_ref,           # (1, A, pred_steps * D)   lane-contiguous output slab
    *, num_edges, pred_steps,
):
    x = x_ref[0]                       # [A, D]
    rt = rt_ref[0]                     # [E, 1]
    rel_sr = rel_sr_ref[...]           # [2E, A]
    rel_rec_t = rel_rec_t_ref[...]     # [A, E]

    A, D = x.shape
    E = num_edges

    w1 = w1_ref[...]
    w2 = w2_ref[...]
    wo1 = wo1_ref[...]
    wo2 = wo2_ref[...]
    wo3 = wo3_ref[...]

    # Hoist bias broadcasts out of the unrolled loop (no CSE of broadcasts).
    b1 = jnp.broadcast_to(b1_ref[...], (E, w1.shape[-1]))      # [E, H1]
    b2 = jnp.broadcast_to(b2_ref[...], (E, w2.shape[-1]))      # [E, MO]
    bo1 = jnp.broadcast_to(bo1_ref[...], (A, wo1.shape[-1]))   # [A, NH]
    bo2 = jnp.broadcast_to(bo2_ref[...], (A, wo2.shape[-1]))   # [A, NH]
    bo3 = jnp.broadcast_to(bo3_ref[...], (A, wo3.shape[-1]))   # [A, D]

    for step in range(pred_steps):     # static, fully unrolled
        # gather senders and receivers with one matmul: [2E, A] @ [A, D]
        sr = jnp.dot(rel_sr, x, preferred_element_type=jnp.float32)       # [2E, D]
        pre = jnp.concatenate([sr[:E], sr[E:]], axis=-1)                  # [E, 2D]

        # msg_fc1 + ReLU   (dropout p=0 -> identity)
        h = jnp.maximum(
            jnp.dot(pre, w1, preferred_element_type=jnp.float32) + b1, 0.0)
        # msg_fc2 + ReLU, then gate by edge-type channel 1
        msg = jnp.maximum(
            jnp.dot(h, w2, preferred_element_type=jnp.float32) + b2, 0.0)  # [E, MO]
        msg = msg * rt                                                     # [E, MO]

        # aggregate per receiver node: rel_rec^T @ msg
        agg = jnp.dot(rel_rec_t, msg, preferred_element_type=jnp.float32)  # [A, MO]

        # out_fc1 on concat([x, agg]) -> out_fc2 -> out_fc3 (tanh)
        aug = jnp.concatenate([x, agg], axis=-1)                           # [A, D+MO]
        p = jnp.maximum(
            jnp.dot(aug, wo1, preferred_element_type=jnp.float32) + bo1, 0.0)
        p = jnp.maximum(
            jnp.dot(p, wo2, preferred_element_type=jnp.float32) + bo2, 0.0)
        p = jnp.tanh(
            jnp.dot(p, wo3, preferred_element_type=jnp.float32) + bo3)

        x = x + p                      # skip connection; carried to next step

        # store this step directly into its static lane slice of the slab
        out_ref[0, :, step * D:(step + 1) * D] = x


# --------------------------------------------------------------------------
# Full MLPDecoder.forward (glue in plain JAX)
# --------------------------------------------------------------------------
def mlp_decoder_forward(inputs, rel_type, rel_rec, rel_send, params, pred_steps=1):
    """
    inputs:   [B, A, T, D]   (batch, num_atoms, timesteps, n_in_node)
    rel_type: [B, E, edge_types]
    rel_rec:  [E, A], rel_send: [E, A]
    returns:  [B, A, pred_steps, D]
    """
    x = jnp.transpose(inputs, (0, 2, 1, 3)).astype(jnp.float32)  # [B, T, A, D]
    B, T, A, D = x.shape
    assert pred_steps <= T
    x0 = x[:, 0, :, :]                                           # [B, A, D]
    rt1 = rel_type[:, :, 1:2].astype(jnp.float32)                # [B, E, 1]
    E = rel_rec.shape[0]

    rel_sr = jnp.concatenate([rel_send, rel_rec], axis=0).astype(jnp.float32)  # [2E, A]
    rel_rec_t = jnp.transpose(rel_rec).astype(jnp.float32)                     # [A, E]
    params = tuple(p.astype(jnp.float32) for p in params)

    kernel = functools.partial(_decoder_kernel, num_edges=E, pred_steps=pred_steps)

    def full_spec(arr):
        nd = arr.ndim
        return pl.BlockSpec(arr.shape, lambda b, _n=nd: (0,) * _n)

    in_specs = [
        pl.BlockSpec((1, A, D), lambda b: (b, 0, 0)),   # x0
        pl.BlockSpec((1, E, 1), lambda b: (b, 0, 0)),   # rel_type[:, :, 1:2]
        full_spec(rel_sr),
        full_spec(rel_rec_t),
    ] + [full_spec(p) for p in params]

    out = pl.pallas_call(
        kernel,
        out_shape=jax.ShapeDtypeStruct((B, A, pred_steps * D), jnp.float32),
        grid=(B,),
        in_specs=in_specs,
        out_specs=pl.BlockSpec((1, A, pred_steps * D), lambda b: (b, 0, 0)),
        compiler_params=pltpu.CompilerParams(
            dimension_semantics=("parallel",)),
    )(x0, rt1, rel_sr, rel_rec_t, *params)

    # (B, A, P*D) -> (B, A, P, D): already the module's output layout.
    return out.reshape(B, A, pred_steps, D)


# --------------------------------------------------------------------------
# Pure-JAX reference (mirrors the PyTorch code) for a correctness check.
# --------------------------------------------------------------------------
def _reference_forward(inputs, rel_type, rel_rec, rel_send, params, pred_steps):
    (w1, b1, w2, b2, wo1, bo1, wo2, bo2, wo3, bo3) = params

    def step(x, rt1):
        recv = jnp.einsum('ea,bad->bed', rel_rec, x)
        send = jnp.einsum('ea,bad->bed', rel_send, x)
        pre = jnp.concatenate([send, recv], axis=-1)
        h = jax.nn.relu(pre @ w1 + b1)
        msg = jax.nn.relu(h @ w2 + b2) * rt1
        agg = jnp.einsum('ae,bem->bam', rel_rec.T, msg)
        aug = jnp.concatenate([x, agg], axis=-1)
        p = jax.nn.relu(aug @ wo1 + bo1)
        p = jax.nn.relu(p @ wo2 + bo2)
        p = jnp.tanh(p @ wo3 + bo3)
        return x + p

    x = jnp.transpose(inputs, (0, 2, 1, 3))
    last = x[:, 0, :, :]
    rt1 = rel_type[:, :, 1:2]
    preds = []
    for _ in range(pred_steps):
        last = step(last, rt1)
        preds.append(last)
    return jnp.transpose(jnp.stack(preds, axis=1), (0, 2, 1, 3))


# --------------------------------------------------------------------------
# Deterministic parameter init (torch.nn.Linear-style uniform)
# --------------------------------------------------------------------------
def init_params(key, n_in_node, msg_hid, msg_out, n_hid):
    def linear(key, fan_in, fan_out):
        kw, kb = jax.random.split(key)
        bound = 1.0 / np.sqrt(fan_in)
        w = jax.random.uniform(kw, (fan_in, fan_out), jnp.float32, -bound, bound)
        b = jax.random.uniform(kb, (1, fan_out), jnp.float32, -bound, bound)
        return w, b

    keys = jax.random.split(key, 5)
    w1, b1 = linear(keys[0], 2 * n_in_node, msg_hid)         # msg_fc1
    w2, b2 = linear(keys[1], msg_hid, msg_out)               # msg_fc2
    wo1, bo1 = linear(keys[2], n_in_node + msg_out, n_hid)   # out_fc1
    wo2, bo2 = linear(keys[3], n_hid, n_hid)                 # out_fc2
    wo3, bo3 = linear(keys[4], n_hid, n_in_node)             # out_fc3
    return (w1, b1, w2, b2, wo1, bo1, wo2, bo2, wo3, bo3)


if __name__ == "__main__":
    # small, module-consistent shapes
    B, A, T, D = 2, 5, 8, 4          # batch, num_atoms, timesteps, n_in_node
    edge_types = 2
    msg_hid = msg_out = n_hid = 32
    pred_steps = 2
    E = A * (A - 1)                  # fully-connected graph without self loops

    key = jax.random.PRNGKey(0)
    k_in, k_rt, k_par = jax.random.split(key, 3)

    inputs = jax.random.normal(k_in, (B, A, T, D), jnp.float32)
    rel_type = jax.nn.softmax(
        jax.random.normal(k_rt, (B, E, edge_types), jnp.float32), axis=-1)

    # one-hot receiver / sender matrices (NRI convention)
    send_idx, recv_idx = [], []
    for i in range(A):
        for j in range(A):
            if i != j:
                send_idx.append(i)
                recv_idx.append(j)
    rel_send = jnp.asarray(np.eye(A, dtype=np.float32)[np.array(send_idx)])
    rel_rec = jnp.asarray(np.eye(A, dtype=np.float32)[np.array(recv_idx)])

    params = init_params(k_par, D, msg_hid, msg_out, n_hid)

    out = mlp_decoder_forward(inputs, rel_type, rel_rec, rel_send, params,
                              pred_steps=pred_steps)
    out = jax.block_until_ready(out)
    assert out.shape == (B, A, pred_steps, D), out.shape

    ref = _reference_forward(inputs, rel_type, rel_rec, rel_send, params,
                             pred_steps)
    np.testing.assert_allclose(np.asarray(out), np.asarray(ref),
                               rtol=1e-5, atol=1e-5)
    print("KERNEL_OK")
</pallas_src>

<mosaic_0001>
module attributes {stable_mosaic.version = 11 : i64} {
  func.func @_decoder_kernel(%arg0: i32, %arg1: memref<1x5x4xf32, #tpu.memory_space<vmem>>, %arg2: memref<1x20x1xf32, #tpu.memory_space<vmem>>, %arg3: memref<40x5xf32, #tpu.memory_space<vmem>>, %arg4: memref<5x20xf32, #tpu.memory_space<vmem>>, %arg5: memref<8x32xf32, #tpu.memory_space<vmem>>, %arg6: memref<1x32xf32, #tpu.memory_space<vmem>>, %arg7: memref<32x32xf32, #tpu.memory_space<vmem>>, %arg8: memref<1x32xf32, #tpu.memory_space<vmem>>, %arg9: memref<36x32xf32, #tpu.memory_space<vmem>>, %arg10: memref<1x32xf32, #tpu.memory_space<vmem>>, %arg11: memref<32x32xf32, #tpu.memory_space<vmem>>, %arg12: memref<1x32xf32, #tpu.memory_space<vmem>>, %arg13: memref<32x4xf32, #tpu.memory_space<vmem>>, %arg14: memref<1x4xf32, #tpu.memory_space<vmem>>, %arg15: memref<1x5x8xf32, #tpu.memory_space<vmem>>) attributes {dimension_semantics = [#tpu.dimension_semantics<parallel>], iteration_bounds = array<i64: 2>, scalar_prefetch = 0 : i64, scratch_operands = 0 : i64, tpu.core_type = #tpu.core_type<tc>, window_params = [{transform_indices = @transform_0, window_bounds = array<i64: 1, 5, 4>}, {transform_indices = @transform_1, window_bounds = array<i64: 1, 20, 1>}, {pipeline_mode = #tpu.pipeline_mode<synchronous>, transform_indices = @transform_2, window_bounds = array<i64: 40, 5>}, {pipeline_mode = #tpu.pipeline_mode<synchronous>, transform_indices = @transform_3, window_bounds = array<i64: 5, 20>}, {pipeline_mode = #tpu.pipeline_mode<synchronous>, transform_indices = @transform_4, window_bounds = array<i64: 8, 32>}, {pipeline_mode = #tpu.pipeline_mode<synchronous>, transform_indices = @transform_5, window_bounds = array<i64: 1, 32>}, {pipeline_mode = #tpu.pipeline_mode<synchronous>, transform_indices = @transform_6, window_bounds = array<i64: 32, 32>}, {pipeline_mode = #tpu.pipeline_mode<synchronous>, transform_indices = @transform_7, window_bounds = array<i64: 1, 32>}, {pipeline_mode = #tpu.pipeline_mode<synchronous>, transform_indices = @transform_8, window_bounds = array<i64: 36, 32>}, {pipeline_mode = #tpu.pipeline_mode<synchronous>, transform_indices = @transform_9, window_bounds = array<i64: 1, 32>}, {pipeline_mode = #tpu.pipeline_mode<synchronous>, transform_indices = @transform_10, window_bounds = array<i64: 32, 32>}, {pipeline_mode = #tpu.pipeline_mode<synchronous>, transform_indices = @transform_11, window_bounds = array<i64: 1, 32>}, {pipeline_mode = #tpu.pipeline_mode<synchronous>, transform_indices = @transform_12, window_bounds = array<i64: 32, 4>}, {pipeline_mode = #tpu.pipeline_mode<synchronous>, transform_indices = @transform_13, window_bounds = array<i64: 1, 4>}, {transform_indices = @transform_14, window_bounds = array<i64: 1, 5, 8>}]} {
    %c0 = arith.constant 0 : index
    %c0_0 = arith.constant 0 : index
    %c0_1 = arith.constant 0 : index
    %0 = vector.load %arg1[%c0, %c0_0, %c0_1] : memref<1x5x4xf32, #tpu.memory_space<vmem>>, vector<1x5x4xf32>
    %1 = vector.shape_cast %0 : vector<1x5x4xf32> to vector<5x4xf32>
    %c0_2 = arith.constant 0 : index
    %c0_3 = arith.constant 0 : index
    %c0_4 = arith.constant 0 : index
    %2 = vector.load %arg2[%c0_2, %c0_3, %c0_4] : memref<1x20x1xf32, #tpu.memory_space<vmem>>, vector<1x20x1xf32>
    %3 = vector.shape_cast %2 : vector<1x20x1xf32> to vector<20x1xf32>
    %c0_5 = arith.constant 0 : index
    %c0_6 = arith.constant 0 : index
    %4 = vector.load %arg3[%c0_5, %c0_6] : memref<40x5xf32, #tpu.memory_space<vmem>>, vector<40x5xf32>
    %c0_7 = arith.constant 0 : index
    %c0_8 = arith.constant 0 : index
    %5 = vector.load %arg4[%c0_7, %c0_8] : memref<5x20xf32, #tpu.memory_space<vmem>>, vector<5x20xf32>
    %c0_9 = arith.constant 0 : index
    %c0_10 = arith.constant 0 : index
    %6 = vector.load %arg5[%c0_9, %c0_10] : memref<8x32xf32, #tpu.memory_space<vmem>>, vector<8x32xf32>
    %c0_11 = arith.constant 0 : index
    %c0_12 = arith.constant 0 : index
    %7 = vector.load %arg7[%c0_11, %c0_12] : memref<32x32xf32, #tpu.memory_space<vmem>>, vector<32x32xf32>
    %c0_13 = arith.constant 0 : index
    %c0_14 = arith.constant 0 : index
    %8 = vector.load %arg9[%c0_13, %c0_14] : memref<36x32xf32, #tpu.memory_space<vmem>>, vector<36x32xf32>
    %c0_15 = arith.constant 0 : index
    %c0_16 = arith.constant 0 : index
    %9 = vector.load %arg11[%c0_15, %c0_16] : memref<32x32xf32, #tpu.memory_space<vmem>>, vector<32x32xf32>
    %c0_17 = arith.constant 0 : index
    %c0_18 = arith.constant 0 : index
    %10 = vector.load %arg13[%c0_17, %c0_18] : memref<32x4xf32, #tpu.memory_space<vmem>>, vector<32x4xf32>
    %c0_19 = arith.constant 0 : index
    %c0_20 = arith.constant 0 : index
    %11 = vector.load %arg6[%c0_19, %c0_20] : memref<1x32xf32, #tpu.memory_space<vmem>>, vector<1x32xf32>
    %12 = vector.shape_cast %11 : vector<1x32xf32> to vector<1x32xf32>
    %13 = vector.broadcast %12 : vector<1x32xf32> to vector<20x32xf32>
    %c0_21 = arith.constant 0 : index
    %c0_22 = arith.constant 0 : index
    %14 = vector.load %arg8[%c0_21, %c0_22] : memref<1x32xf32, #tpu.memory_space<vmem>>, vector<1x32xf32>
    %15 = vector.shape_cast %14 : vector<1x32xf32> to vector<1x32xf32>
    %16 = vector.broadcast %15 : vector<1x32xf32> to vector<20x32xf32>
    %c0_23 = arith.constant 0 : index
    %c0_24 = arith.constant 0 : index
    %17 = vector.load %arg10[%c0_23, %c0_24] : memref<1x32xf32, #tpu.memory_space<vmem>>, vector<1x32xf32>
    %18 = vector.shape_cast %17 : vector<1x32xf32> to vector<1x32xf32>
    %19 = vector.broadcast %18 : vector<1x32xf32> to vector<5x32xf32>
    %c0_25 = arith.constant 0 : index
    %c0_26 = arith.constant 0 : index
    %20 = vector.load %arg12[%c0_25, %c0_26] : memref<1x32xf32, #tpu.memory_space<vmem>>, vector<1x32xf32>
    %21 = vector.shape_cast %20 : vector<1x32xf32> to vector<1x32xf32>
    %22 = vector.broadcast %21 : vector<1x32xf32> to vector<5x32xf32>
    %c0_27 = arith.constant 0 : index
    %c0_28 = arith.constant 0 : index
    %23 = vector.load %arg14[%c0_27, %c0_28] : memref<1x4xf32, #tpu.memory_space<vmem>>, vector<1x4xf32>
    %24 = vector.shape_cast %23 : vector<1x4xf32> to vector<1x4xf32>
    %25 = vector.broadcast %24 : vector<1x4xf32> to vector<5x4xf32>
    %cst = arith.constant dense<0.000000e+00> : vector<40x4xf32>
    %26 = tpu.matmul %4, %1, %cst {dimension_numbers = #tpu.dot_dimension_numbers<[1], [0], [0], [1], [0, 0, 1, 1], [], []>} : vector<40x5xf32>, vector<5x4xf32>, vector<40x4xf32> -> vector<40x4xf32>
    %27 = vector.extract_strided_slice %26 {offsets = [0, 0], sizes = [20, 4], strides = [1, 1]} : vector<40x4xf32> to vector<20x4xf32>
    %28 = vector.extract_strided_slice %26 {offsets = [20, 0], sizes = [20, 4], strides = [1, 1]} : vector<40x4xf32> to vector<20x4xf32>
    %29 = tpu.concatenate %27, %28 in 1 : vector<20x4xf32>, vector<20x4xf32> -> vector<20x8xf32>
    %cst_29 = arith.constant dense<0.000000e+00> : vector<20x32xf32>
    %30 = tpu.matmul %29, %6, %cst_29 {dimension_numbers = #tpu.dot_dimension_numbers<[1], [0], [0], [1], [0, 0, 1, 1], [], []>} : vector<20x8xf32>, vector<8x32xf32>, vector<20x32xf32> -> vector<20x32xf32>
    %31 = arith.addf %30, %13 : vector<20x32xf32>
    %cst_30 = arith.constant 0.000000e+00 : f32
    %32 = vector.broadcast %cst_30 : f32 to vector<20x32xf32>
    %33 = arith.maximumf %31, %32 : vector<20x32xf32>
    %cst_31 = arith.constant dense<0.000000e+00> : vector<20x32xf32>
    %34 = tpu.matmul %33, %7, %cst_31 {dimension_numbers = #tpu.dot_dimension_numbers<[1], [0], [0], [1], [0, 0, 1, 1], [], []>} : vector<20x32xf32>, vector<32x32xf32>, vector<20x32xf32> -> vector<20x32xf32>
    %35 = arith.addf %34, %16 : vector<20x32xf32>
    %cst_32 = arith.constant 0.000000e+00 : f32
    %36 = vector.broadcast %cst_32 : f32 to vector<20x32xf32>
    %37 = arith.maximumf %35, %36 : vector<20x32xf32>
    %38 = vector.broadcast %3 : vector<20x1xf32> to vector<20x32xf32>
    %39 = arith.mulf %37, %38 : vector<20x32xf32>
    %cst_33 = arith.constant dense<0.000000e+00> : vector<5x32xf32>
    %40 = tpu.matmul %5, %39, %cst_33 {dimension_numbers = #tpu.dot_dimension_numbers<[1], [0], [0], [1], [0, 0, 1, 1], [], []>} : vector<5x20xf32>, vector<20x32xf32>, vector<5x32xf32> -> vector<5x32xf32>
    %41 = tpu.concatenate %1, %40 in 1 : vector<5x4xf32>, vector<5x32xf32> -> vector<5x36xf32>
    %cst_34 = arith.constant dense<0.000000e+00> : vector<5x32xf32>
    %42 = tpu.matmul %41, %8, %cst_34 {dimension_numbers = #tpu.dot_dimension_numbers<[1], [0], [0], [1], [0, 0, 1, 1], [], []>} : vector<5x36xf32>, vector<36x32xf32>, vector<5x32xf32> -> vector<5x32xf32>
    %43 = arith.addf %42, %19 : vector<5x32xf32>
    %cst_35 = arith.constant 0.000000e+00 : f32
    %44 = vector.broadcast %cst_35 : f32 to vector<5x32xf32>
    %45 = arith.maximumf %43, %44 : vector<5x32xf32>
    %cst_36 = arith.constant dense<0.000000e+00> : vector<5x32xf32>
    %46 = tpu.matmul %45, %9, %cst_36 {dimension_numbers = #tpu.dot_dimension_numbers<[1], [0], [0], [1], [0, 0, 1, 1], [], []>} : vector<5x32xf32>, vector<32x32xf32>, vector<5x32xf32> -> vector<5x32xf32>
    %47 = arith.addf %46, %22 : vector<5x32xf32>
    %cst_37 = arith.constant 0.000000e+00 : f32
    %48 = vector.broadcast %cst_37 : f32 to vector<5x32xf32>
    %49 = arith.maximumf %47, %48 : vector<5x32xf32>
    %cst_38 = arith.constant dense<0.000000e+00> : vector<5x4xf32>
    %50 = tpu.matmul %49, %10, %cst_38 {dimension_numbers = #tpu.dot_dimension_numbers<[1], [0], [0], [1], [0, 0, 1, 1], [], []>} : vector<5x32xf32>, vector<32x4xf32>, vector<5x4xf32> -> vector<5x4xf32>
    %51 = arith.addf %50, %25 : vector<5x4xf32>
    %52 = math.tanh %51 : vector<5x4xf32>
    %53 = arith.addf %1, %52 : vector<5x4xf32>
    %c0_39 = arith.constant 0 : index
    %c0_40 = arith.constant 0 : index
    %c0_41 = arith.constant 0 : index
    %54 = vector.load %arg15[%c0_39, %c0_40, %c0_41] : memref<1x5x8xf32, #tpu.memory_space<vmem>>, vector<1x5x4xf32>
    %55 = vector.shape_cast %54 : vector<1x5x4xf32> to vector<5x4xf32>
    %56 = vector.shape_cast %53 : vector<5x4xf32> to vector<1x5x4xf32>
    tpu.vector_store %arg15[%c0_39, %c0_40, %c0_41], %56 {strides = array<i32>} : memref<1x5x8xf32, #tpu.memory_space<vmem>>, vector<1x5x4xf32>,
    %cst_42 = arith.constant dense<0.000000e+00> : vector<40x4xf32>
    %57 = tpu.matmul %4, %53, %cst_42 {dimension_numbers = #tpu.dot_dimension_numbers<[1], [0], [0], [1], [0, 0, 1, 1], [], []>} : vector<40x5xf32>, vector<5x4xf32>, vector<40x4xf32> -> vector<40x4xf32>
    %58 = vector.extract_strided_slice %57 {offsets = [0, 0], sizes = [20, 4], strides = [1, 1]} : vector<40x4xf32> to vector<20x4xf32>
    %59 = vector.extract_strided_slice %57 {offsets = [20, 0], sizes = [20, 4], strides = [1, 1]} : vector<40x4xf32> to vector<20x4xf32>
    %60 = tpu.concatenate %58, %59 in 1 : vector<20x4xf32>, vector<20x4xf32> -> vector<20x8xf32>
    %cst_43 = arith.constant dense<0.000000e+00> : vector<20x32xf32>
    %61 = tpu.matmul %60, %6, %cst_43 {dimension_numbers = #tpu.dot_dimension_numbers<[1], [0], [0], [1], [0, 0, 1, 1], [], []>} : vector<20x8xf32>, vector<8x32xf32>, vector<20x32xf32> -> vector<20x32xf32>
    %62 = arith.addf %61, %13 : vector<20x32xf32>
    %cst_44 = arith.constant 0.000000e+00 : f32
    %63 = vector.broadcast %cst_44 : f32 to vector<20x32xf32>
    %64 = arith.maximumf %62, %63 : vector<20x32xf32>
    %cst_45 = arith.constant dense<0.000000e+00> : vector<20x32xf32>
    %65 = tpu.matmul %64, %7, %cst_45 {dimension_numbers = #tpu.dot_dimension_numbers<[1], [0], [0], [1], [0, 0, 1, 1], [], []>} : vector<20x32xf32>, vector<32x32xf32>, vector<20x32xf32> -> vector<20x32xf32>
    %66 = arith.addf %65, %16 : vector<20x32xf32>
    %cst_46 = arith.constant 0.000000e+00 : f32
    %67 = vector.broadcast %cst_46 : f32 to vector<20x32xf32>
    %68 = arith.maximumf %66, %67 : vector<20x32xf32>
    %69 = vector.broadcast %3 : vector<20x1xf32> to vector<20x32xf32>
    %70 = arith.mulf %68, %69 : vector<20x32xf32>
    %cst_47 = arith.constant dense<0.000000e+00> : vector<5x32xf32>
    %71 = tpu.matmul %5, %70, %cst_47 {dimension_numbers = #tpu.dot_dimension_numbers<[1], [0], [0], [1], [0, 0, 1, 1], [], []>} : vector<5x20xf32>, vector<20x32xf32>, vector<5x32xf32> -> vector<5x32xf32>
    %72 = tpu.concatenate %53, %71 in 1 : vector<5x4xf32>, vector<5x32xf32> -> vector<5x36xf32>
    %cst_48 = arith.constant dense<0.000000e+00> : vector<5x32xf32>
    %73 = tpu.matmul %72, %8, %cst_48 {dimension_numbers = #tpu.dot_dimension_numbers<[1], [0], [0], [1], [0, 0, 1, 1], [], []>} : vector<5x36xf32>, vector<36x32xf32>, vector<5x32xf32> -> vector<5x32xf32>
    %74 = arith.addf %73, %19 : vector<5x32xf32>
    %cst_49 = arith.constant 0.000000e+00 : f32
    %75 = vector.broadcast %cst_49 : f32 to vector<5x32xf32>
    %76 = arith.maximumf %74, %75 : vector<5x32xf32>
    %cst_50 = arith.constant dense<0.000000e+00> : vector<5x32xf32>
    %77 = tpu.matmul %76, %9, %cst_50 {dimension_numbers = #tpu.dot_dimension_numbers<[1], [0], [0], [1], [0, 0, 1, 1], [], []>} : vector<5x32xf32>, vector<32x32xf32>, vector<5x32xf32> -> vector<5x32xf32>
    %78 = arith.addf %77, %22 : vector<5x32xf32>
    %cst_51 = arith.constant 0.000000e+00 : f32
    %79 = vector.broadcast %cst_51 : f32 to vector<5x32xf32>
    %80 = arith.maximumf %78, %79 : vector<5x32xf32>
    %cst_52 = arith.constant dense<0.000000e+00> : vector<5x4xf32>
    %81 = tpu.matmul %80, %10, %cst_52 {dimension_numbers = #tpu.dot_dimension_numbers<[1], [0], [0], [1], [0, 0, 1, 1], [], []>} : vector<5x32xf32>, vector<32x4xf32>, vector<5x4xf32> -> vector<5x4xf32>
    %82 = arith.addf %81, %25 : vector<5x4xf32>
    %83 = math.tanh %82 : vector<5x4xf32>
    %84 = arith.addf %53, %83 : vector<5x4xf32>
    %c0_53 = arith.constant 0 : index
    %c0_54 = arith.constant 0 : index
    %c4 = arith.constant 4 : index
    %85 = vector.load %arg15[%c0_53, %c0_54, %c4] : memref<1x5x8xf32, #tpu.memory_space<vmem>>, vector<1x5x4xf32>
    %86 = vector.shape_cast %85 : vector<1x5x4xf32> to vector<5x4xf32>
    %87 = vector.shape_cast %84 : vector<5x4xf32> to vector<1x5x4xf32>
    tpu.vector_store %arg15[%c0_53, %c0_54, %c4], %87 {strides = array<i32>} : memref<1x5x8xf32, #tpu.memory_space<vmem>>, vector<1x5x4xf32>,
    return
  }
  func.func @transform_0(%arg0: i32) -> (i32, i32, i32) {
    %c0_i32 = arith.constant 0 : i32
    %c0_i32_0 = arith.constant 0 : i32
    %c0_i32_1 = arith.constant 0 : i32
    return %arg0, %c0_i32, %c0_i32_0 : i32, i32, i32
  }
  func.func @transform_1(%arg0: i32) -> (i32, i32, i32) {
    %c0_i32 = arith.constant 0 : i32
    %c0_i32_0 = arith.constant 0 : i32
    %c0_i32_1 = arith.constant 0 : i32
    return %arg0, %c0_i32, %c0_i32_0 : i32, i32, i32
  }
  func.func @transform_2(%arg0: i32) -> (i32, i32) {
    %c0_i32 = arith.constant 0 : i32
    %c0_i32_0 = arith.constant 0 : i32
    %c0_i32_1 = arith.constant 0 : i32
    return %c0_i32, %c0_i32_0 : i32, i32
  }
  func.func @transform_3(%arg0: i32) -> (i32, i32) {
    %c0_i32 = arith.constant 0 : i32
    %c0_i32_0 = arith.constant 0 : i32
    %c0_i32_1 = arith.constant 0 : i32
    return %c0_i32, %c0_i32_0 : i32, i32
  }
  func.func @transform_4(%arg0: i32) -> (i32, i32) {
    %c0_i32 = arith.constant 0 : i32
    %c0_i32_0 = arith.constant 0 : i32
    %c0_i32_1 = arith.constant 0 : i32
    return %c0_i32, %c0_i32_0 : i32, i32
  }
  func.func @transform_5(%arg0: i32) -> (i32, i32) {
    %c0_i32 = arith.constant 0 : i32
    %c0_i32_0 = arith.constant 0 : i32
    %c0_i32_1 = arith.constant 0 : i32
    return %c0_i32, %c0_i32_0 : i32, i32
  }
  func.func @transform_6(%arg0: i32) -> (i32, i32) {
    %c0_i32 = arith.constant 0 : i32
    %c0_i32_0 = arith.constant 0 : i32
    %c0_i32_1 = arith.constant 0 : i32
    return %c0_i32, %c0_i32_0 : i32, i32
  }
  func.func @transform_7(%arg0: i32) -> (i32, i32) {
    %c0_i32 = arith.constant 0 : i32
    %c0_i32_0 = arith.constant 0 : i32
    %c0_i32_1 = arith.constant 0 : i32
    return %c0_i32, %c0_i32_0 : i32, i32
  }
  func.func @transform_8(%arg0: i32) -> (i32, i32) {
    %c0_i32 = arith.constant 0 : i32
    %c0_i32_0 = arith.constant 0 : i32
    %c0_i32_1 = arith.constant 0 : i32
    return %c0_i32, %c0_i32_0 : i32, i32
  }
  func.func @transform_9(%arg0: i32) -> (i32, i32) {
    %c0_i32 = arith.constant 0 : i32
    %c0_i32_0 = arith.constant 0 : i32
    %c0_i32_1 = arith.constant 0 : i32
    return %c0_i32, %c0_i32_0 : i32, i32
  }
  func.func @transform_10(%arg0: i32) -> (i32, i32) {
    %c0_i32 = arith.constant 0 : i32
    %c0_i32_0 = arith.constant 0 : i32
    %c0_i32_1 = arith.constant 0 : i32
    return %c0_i32, %c0_i32_0 : i32, i32
  }
  func.func @transform_11(%arg0: i32) -> (i32, i32) {
    %c0_i32 = arith.constant 0 : i32
    %c0_i32_0 = arith.constant 0 : i32
    %c0_i32_1 = arith.constant 0 : i32
    return %c0_i32, %c0_i32_0 : i32, i32
  }
  func.func @transform_12(%arg0: i32) -> (i32, i32) {
    %c0_i32 = arith.constant 0 : i32
    %c0_i32_0 = arith.constant 0 : i32
    %c0_i32_1 = arith.constant 0 : i32
    return %c0_i32, %c0_i32_0 : i32, i32
  }
  func.func @transform_13(%arg0: i32) -> (i32, i32) {
    %c0_i32 = arith.constant 0 : i32
    %c0_i32_0 = arith.constant 0 : i32
    %c0_i32_1 = arith.constant 0 : i32
    return %c0_i32, %c0_i32_0 : i32, i32
  }
  func.func @transform_14(%arg0: i32) -> (i32, i32, i32) {
    %c0_i32 = arith.constant 0 : i32
    %c0_i32_0 = arith.constant 0 : i32
    %c0_i32_1 = arith.constant 0 : i32
    return %arg0, %c0_i32, %c0_i32_0 : i32, i32, i32
  }
}

</mosaic_0001>

<llo_original>
// kernel: tpu_custom_call.1
$region0: #{tpu_custom_call.1}
  #allocation0 [shape = 'u32[]', space=smem, size = 0x4, offset = 0x4, fixed_abs, tag = 'smem constant byte address 0x4 - core index']
  #allocation1 [shape = 'u32[144,128]{1,0:T(1,128)}', space=vmem, size = 0x12000, scoped, tag = 'internal scratch']
  %s0 = inlined_call_operand.vmem [shape: f32[2,5,4], index: 0, kind: input, shape index: {}]
  %s1 = inlined_call_operand.vmem [shape: f32[2,20,1], index: 1, kind: input, shape index: {}]
  %s2 = inlined_call_operand.vmem [shape: f32[40,5], index: 2, kind: input, shape index: {}]
  %s3 = inlined_call_operand.vmem [shape: f32[5,20], index: 3, kind: input, shape index: {}]
  %s4 = inlined_call_operand.vmem [shape: f32[8,32], index: 4, kind: input, shape index: {}]
  %s5 = inlined_call_operand.vmem [shape: f32[1,32], index: 5, kind: input, shape index: {}]
  %s6 = inlined_call_operand.vmem [shape: f32[32,32], index: 6, kind: input, shape index: {}]
  %s7 = inlined_call_operand.vmem [shape: f32[1,32], index: 7, kind: input, shape index: {}]
  %s8 = inlined_call_operand.vmem [shape: f32[36,32], index: 8, kind: input, shape index: {}]
  %s9 = inlined_call_operand.vmem [shape: f32[1,32], index: 9, kind: input, shape index: {}]
  %s10 = inlined_call_operand.vmem [shape: f32[32,32], index: 10, kind: input, shape index: {}]
  %s11 = inlined_call_operand.vmem [shape: f32[1,32], index: 11, kind: input, shape index: {}]
  %s12 = inlined_call_operand.vmem [shape: f32[32,4], index: 12, kind: input, shape index: {}]
  %s13 = inlined_call_operand.vmem [shape: f32[1,4], index: 13, kind: input, shape index: {}]
  %s14 = inlined_call_operand.vmem [shape: f32[2,5,8], index: 14, kind: output, shape index: {}]
  %s15 = sld [smem:[#allocation0]]
  $region89: #{tpu_custom_call.1} parent=0
    _
  %s17 = ssub.s32 1, %s15
  %s18 = scalar_select 0, %s17, %s15
  loop: start=0, step=1, limit=4
  $region2: #{tpu_custom_call.1} parent=0 // loop_pre_header
    _
  $region3: #{tpu_custom_call.1} parent=0 // loop_header
    %s20 = sphi 0, %s24
    %p21 = scmp.ge.s32.totalorder %s20, 4
    %s30 = sphi 0, %s32
    %s33 = sphi 0, %s30
    %s34 = sphi 0, %s33
    %s50 = sphi 0, %s34
    %s56 = sphi 0, %s58
    %s59 = sphi 0, %s56
    %s60 = sphi 0, %s59
    %s76 = sphi 0, %s60
    %s80 = sphi 0, %s80
    %s82 = sphi 0, %s80
    %s83 = sphi 0, %s82
    %s97 = sphi 0, %s83
    %s101 = sphi 0, %s101
    %s103 = sphi 0, %s101
    %s104 = sphi 0, %s103
    %s118 = sphi 0, %s104
    %s122 = sphi 0, %s122
    %s124 = sphi 0, %s122
    %s125 = sphi 0, %s124
    %s139 = sphi 0, %s125
    %s143 = sphi 0, %s143
    %s145 = sphi 0, %s143
    %s146 = sphi 0, %s145
    %s160 = sphi 0, %s146
    %s164 = sphi 0, %s164
    %s166 = sphi 0, %s164
    %s167 = sphi 0, %s166
    %s181 = sphi 0, %s167
    %s185 = sphi 0, %s185
    %s187 = sphi 0, %s185
    %s188 = sphi 0, %s187
    %s202 = sphi 0, %s188
    %s206 = sphi 0, %s206
    %s208 = sphi 0, %s206
    %s209 = sphi 0, %s208
    %s223 = sphi 0, %s209
    %s227 = sphi 0, %s227
    %s229 = sphi 0, %s227
    %s230 = sphi 0, %s229
    %s244 = sphi 0, %s230
    %s248 = sphi 0, %s248
    %s250 = sphi 0, %s248
    %s251 = sphi 0, %s250
    %s265 = sphi 0, %s251
    %s269 = sphi 0, %s269
    %s271 = sphi 0, %s269
    %s272 = sphi 0, %s271
    %s286 = sphi 0, %s272
    %s290 = sphi 0, %s290
    %s292 = sphi 0, %s290
    %s293 = sphi 0, %s292
    %s307 = sphi 0, %s293
    %s311 = sphi 0, %s311
    %s313 = sphi 0, %s311
    %s314 = sphi 0, %s313
    %s328 = sphi 0, %s314
    %s334 = sphi 0, %s336
    %s337 = sphi 0, %s334
    %s338 = sphi 0, %s337
    %s354 = sphi 0, %s338
  $region4: #{tpu_custom_call.1} parent=0 // loop_header_branch
    %23 = sbr.rel (%p21) target = $region8
  $region5: #{tpu_custom_call.1} parent=0 // loop_body
    %s25 = ssub.s32 %s20, 1
    %s26 = ssub.s32 %s20, 2
    %s27 = sadd.s32 %s20, 1
    %s28 = ssub.s32 %s20, %s27
    %p29 = scmp.eq.s32.totalorder %s28, 0
    %s31 = sadd.s32 %s30, 1
    %s32 = scalar_select %p29, %s30, %s31
    %p35 = pneg %p29
    %p36 = scmp.eq.s32.totalorder %s20, 1
    %p37 = por %p35, %p36
    %p38 = scmp.ne.s32.totalorder %s30, %s33
    %p39 = scmp.eq.s32.totalorder %s20, 0
    %p40 = por %p38, %p39
    %p41 = scmp.ne.s32.totalorder %s30, %s33
    %p42 = scmp.eq.s32.totalorder %s25, 1
    %p43 = por %p41, %p42
    %p44 = scmp.ne.s32.totalorder %s33, %s34
    %p45 = scmp.eq.s32.totalorder %s25, 0
    %p46 = por %p44, %p45
    %p47 = scmp.ne.s32.totalorder %s33, %s34
    %p48 = scmp.eq.s32.totalorder %s26, 1
    %p49 = por %p47, %p48
    %p51 = scmp.ne.s32.totalorder %s34, %s50
    %p52 = scmp.eq.s32.totalorder %s26, 0
    %p53 = por %p51, %p52
    %s54 = ssub.s32 %s20, %s27
    %p55 = scmp.eq.s32.totalorder %s54, 0
    %s57 = sadd.s32 %s56, 1
    %s58 = scalar_select %p55, %s56, %s57
    %p61 = pneg %p55
    %p62 = scmp.eq.s32.totalorder %s20, 1
    %p63 = por %p61, %p62
    %p64 = scmp.ne.s32.totalorder %s56, %s59
    %p65 = scmp.eq.s32.totalorder %s20, 0
    %p66 = por %p64, %p65
    %p67 = scmp.ne.s32.totalorder %s56, %s59
    %p68 = scmp.eq.s32.totalorder %s25, 1
    %p69 = por %p67, %p68
    %p70 = scmp.ne.s32.totalorder %s59, %s60
    %p71 = scmp.eq.s32.totalorder %s25, 0
    %p72 = por %p70, %p71
    %p73 = scmp.ne.s32.totalorder %s59, %s60
    %p74 = scmp.eq.s32.totalorder %s26, 1
    %p75 = por %p73, %p74
    %p77 = scmp.ne.s32.totalorder %s60, %s76
    %p78 = scmp.eq.s32.totalorder %s26, 0
    %p79 = por %p77, %p78
    %s81 = sadd.s32 %s80, 1
    %p84 = scmp.eq.s32.totalorder %s20, 1
    %p85 = scmp.ne.s32.totalorder %s80, %s82
    %p86 = scmp.eq.s32.totalorder %s20, 0
    %p87 = por %p85, %p86
    %p88 = scmp.ne.s32.totalorder %s80, %s82
    %p89 = scmp.eq.s32.totalorder %s25, 1
    %p90 = por %p88, %p89
    %p91 = scmp.ne.s32.totalorder %s82, %s83
    %p92 = scmp.eq.s32.totalorder %s25, 0
    %p93 = por %p91, %p92
    %p94 = scmp.ne.s32.totalorder %s82, %s83
    %p95 = scmp.eq.s32.totalorder %s26, 1
    %p96 = por %p94, %p95
    %p98 = scmp.ne.s32.totalorder %s83, %s97
    %p99 = scmp.eq.s32.totalorder %s26, 0
    %p100 = por %p98, %p99
    %s102 = sadd.s32 %s101, 1
    %p105 = scmp.eq.s32.totalorder %s20, 1
    %p106 = scmp.ne.s32.totalorder %s101, %s103
    %p107 = scmp.eq.s32.totalorder %s20, 0
    %p108 = por %p106, %p107
    %p109 = scmp.ne.s32.totalorder %s101, %s103
    %p110 = scmp.eq.s32.totalorder %s25, 1
    %p111 = por %p109, %p110
    %p112 = scmp.ne.s32.totalorder %s103, %s104
    %p113 = scmp.eq.s32.totalorder %s25, 0
    %p114 = por %p112, %p113
    %p115 = scmp.ne.s32.totalorder %s103, %s104
    %p116 = scmp.eq.s32.totalorder %s26, 1
    %p117 = por %p115, %p116
    %p119 = scmp.ne.s32.totalorder %s104, %s118
    %p120 = scmp.eq.s32.totalorder %s26, 0
    %p121 = por %p119, %p120
    %s123 = sadd.s32 %s122, 1
    %p126 = scmp.eq.s32.totalorder %s20, 1
    %p127 = scmp.ne.s32.totalorder %s122, %s124
    %p128 = scmp.eq.s32.totalorder %s20, 0
    %p129 = por %p127, %p128
    %p130 = scmp.ne.s32.totalorder %s122, %s124
    %p131 = scmp.eq.s32.totalorder %s25, 1
    %p132 = por %p130, %p131
    %p133 = scmp.ne.s32.totalorder %s124, %s125
    %p134 = scmp.eq.s32.totalorder %s25, 0
    %p135 = por %p133, %p134
    %p136 = scmp.ne.s32.totalorder %s124, %s125
    %p137 = scmp.eq.s32.totalorder %s26, 1
    %p138 = por %p136, %p137
    %p140 = scmp.ne.s32.totalorder %s125, %s139
    %p141 = scmp.eq.s32.totalorder %s26, 0
    %p142 = por %p140, %p141
    %s144 = sadd.s32 %s143, 1
    %p147 = scmp.eq.s32.totalorder %s20, 1
    %p148 = scmp.ne.s32.totalorder %s143, %s145
    %p149 = scmp.eq.s32.totalorder %s20, 0
    %p150 = por %p148, %p149
    %p151 = scmp.ne.s32.totalorder %s143, %s145
    %p152 = scmp.eq.s32.totalorder %s25, 1
    %p153 = por %p151, %p152
    %p154 = scmp.ne.s32.totalorder %s145, %s146
    %p155 = scmp.eq.s32.totalorder %s25, 0
    %p156 = por %p154, %p155
    %p157 = scmp.ne.s32.totalorder %s145, %s146
    %p158 = scmp.eq.s32.totalorder %s26, 1
    %p159 = por %p157, %p158
    %p161 = scmp.ne.s32.totalorder %s146, %s160
    %p162 = scmp.eq.s32.totalorder %s26, 0
    %p163 = por %p161, %p162
    %s165 = sadd.s32 %s164, 1
    %p168 = scmp.eq.s32.totalorder %s20, 1
    %p169 = scmp.ne.s32.totalorder %s164, %s166
    %p170 = scmp.eq.s32.totalorder %s20, 0
    %p171 = por %p169, %p170
    %p172 = scmp.ne.s32.totalorder %s164, %s166
    %p173 = scmp.eq.s32.totalorder %s25, 1
    %p174 = por %p172, %p173
    %p175 = scmp.ne.s32.totalorder %s166, %s167
    %p176 = scmp.eq.s32.totalorder %s25, 0
    %p177 = por %p175, %p176
    %p178 = scmp.ne.s32.totalorder %s166, %s167
    %p179 = scmp.eq.s32.totalorder %s26, 1
    %p180 = por %p178, %p179
    %p182 = scmp.ne.s32.totalorder %s167, %s181
    %p183 = scmp.eq.s32.totalorder %s26, 0
    %p184 = por %p182, %p183
    %s186 = sadd.s32 %s185, 1
    %p189 = scmp.eq.s32.totalorder %s20, 1
    %p190 = scmp.ne.s32.totalorder %s185, %s187
    %p191 = scmp.eq.s32.totalorder %s20, 0
    %p192 = por %p190, %p191
    %p193 = scmp.ne.s32.totalorder %s185, %s187
    %p194 = scmp.eq.s32.totalorder %s25, 1
    %p195 = por %p193, %p194
    %p196 = scmp.ne.s32.totalorder %s187, %s188
    %p197 = scmp.eq.s32.totalorder %s25, 0
    %p198 = por %p196, %p197
    %p199 = scmp.ne.s32.totalorder %s187, %s188
    %p200 = scmp.eq.s32.totalorder %s26, 1
    %p201 = por %p199, %p200
    %p203 = scmp.ne.s32.totalorder %s188, %s202
    %p204 = scmp.eq.s32.totalorder %s26, 0
    %p205 = por %p203, %p204
    %s207 = sadd.s32 %s206, 1
    %p210 = scmp.eq.s32.totalorder %s20, 1
    %p211 = scmp.ne.s32.totalorder %s206, %s208
    %p212 = scmp.eq.s32.totalorder %s20, 0
    %p213 = por %p211, %p212
    %p214 = scmp.ne.s32.totalorder %s206, %s208
    %p215 = scmp.eq.s32.totalorder %s25, 1
    %p216 = por %p214, %p215
    %p217 = scmp.ne.s32.totalorder %s208, %s209
    %p218 = scmp.eq.s32.totalorder %s25, 0
    %p219 = por %p217, %p218
    %p220 = scmp.ne.s32.totalorder %s208, %s209
    %p221 = scmp.eq.s32.totalorder %s26, 1
    %p222 = por %p220, %p221
    %p224 = scmp.ne.s32.totalorder %s209, %s223
    %p225 = scmp.eq.s32.totalorder %s26, 0
    %p226 = por %p224, %p225
    %s228 = sadd.s32 %s227, 1
    %p231 = scmp.eq.s32.totalorder %s20, 1
    %p232 = scmp.ne.s32.totalorder %s227, %s229
    %p233 = scmp.eq.s32.totalorder %s20, 0
    %p234 = por %p232, %p233
    %p235 = scmp.ne.s32.totalorder %s227, %s229
    %p236 = scmp.eq.s32.totalorder %s25, 1
    %p237 = por %p235, %p236
    %p238 = scmp.ne.s32.totalorder %s229, %s230
    %p239 = scmp.eq.s32.totalorder %s25, 0
    %p240 = por %p238, %p239
    %p241 = scmp.ne.s32.totalorder %s229, %s230
    %p242 = scmp.eq.s32.totalorder %s26, 1
    %p243 = por %p241, %p242
    %p245 = scmp.ne.s32.totalorder %s230, %s244
    %p246 = scmp.eq.s32.totalorder %s26, 0
    %p247 = por %p245, %p246
    %s249 = sadd.s32 %s248, 1
    %p252 = scmp.eq.s32.totalorder %s20, 1
    %p253 = scmp.ne.s32.totalorder %s248, %s250
    %p254 = scmp.eq.s32.totalorder %s20, 0
    %p255 = por %p253, %p254
    %p256 = scmp.ne.s32.totalorder %s248, %s250
    %p257 = scmp.eq.s32.totalorder %s25, 1
    %p258 = por %p256, %p257
    %p259 = scmp.ne.s32.totalorder %s250, %s251
    %p260 = scmp.eq.s32.totalorder %s25, 0
    %p261 = por %p259, %p260
    %p262 = scmp.ne.s32.totalorder %s250, %s251
    %p263 = scmp.eq.s32.totalorder %s26, 1
    %p264 = por %p262, %p263
    %p266 = scmp.ne.s32.totalorder %s251, %s265
    %p267 = scmp.eq.s32.totalorder %s26, 0
    %p268 = por %p266, %p267
    %s270 = sadd.s32 %s269, 1
    %p273 = scmp.eq.s32.totalorder %s20, 1
    %p274 = scmp.ne.s32.totalorder %s269, %s271
    %p275 = scmp.eq.s32.totalorder %s20, 0
    %p276 = por %p274, %p275
    %p277 = scmp.ne.s32.totalorder %s269, %s271
    %p278 = scmp.eq.s32.totalorder %s25, 1
    %p279 = por %p277, %p278
    %p280 = scmp.ne.s32.totalorder %s271, %s272
    %p281 = scmp.eq.s32.totalorder %s25, 0
    %p282 = por %p280, %p281
    %p283 = scmp.ne.s32.totalorder %s271, %s272
    %p284 = scmp.eq.s32.totalorder %s26, 1
    %p285 = por %p283, %p284
    %p287 = scmp.ne.s32.totalorder %s272, %s286
    %p288 = scmp.eq.s32.totalorder %s26, 0
    %p289 = por %p287, %p288
    %s291 = sadd.s32 %s290, 1
    %p294 = scmp.eq.s32.totalorder %s20, 1
    %p295 = scmp.ne.s32.totalorder %s290, %s292
    %p296 = scmp.eq.s32.totalorder %s20, 0
    %p297 = por %p295, %p296
    %p298 = scmp.ne.s32.totalorder %s290, %s292
    %p299 = scmp.eq.s32.totalorder %s25, 1
    %p300 = por %p298, %p299
    %p301 = scmp.ne.s32.totalorder %s292, %s293
    %p302 = scmp.eq.s32.totalorder %s25, 0
    %p303 = por %p301, %p302
    %p304 = scmp.ne.s32.totalorder %s292, %s293
    %p305 = scmp.eq.s32.totalorder %s26, 1
    %p306 = por %p304, %p305
    %p308 = scmp.ne.s32.totalorder %s293, %s307
    %p309 = scmp.eq.s32.totalorder %s26, 0
    %p310 = por %p308, %p309
    %s312 = sadd.s32 %s311, 1
    %p315 = scmp.eq.s32.totalorder %s20, 1
    %p316 = scmp.ne.s32.totalorder %s311, %s313
    %p317 = scmp.eq.s32.totalorder %s20, 0
    %p318 = por %p316, %p317
    %p319 = scmp.ne.s32.totalorder %s311, %s313
    %p320 = scmp.eq.s32.totalorder %s25, 1
    %p321 = por %p319, %p320
    %p322 = scmp.ne.s32.totalorder %s313, %s314
    %p323 = scmp.eq.s32.totalorder %s25, 0
    %p324 = por %p322, %p323
    %p325 = scmp.ne.s32.totalorder %s313, %s314
    %p326 = scmp.eq.s32.totalorder %s26, 1
    %p327 = por %p325, %p326
    %p329 = scmp.ne.s32.totalorder %s314, %s328
    %p330 = scmp.eq.s32.totalorder %s26, 0
    %p331 = por %p329, %p330
    %s332 = ssub.s32 %s20, %s27
    %p333 = scmp.eq.s32.totalorder %s332, 0
    %s335 = sadd.s32 %s334, 1
    %s336 = scalar_select %p333, %s334, %s335
    %p339 = pneg %p333
    %p340 = scmp.eq.s32.totalorder %s20, 1
    %p341 = por %p339, %p340
    %p342 = scmp.ne.s32.totalorder %s334, %s337
    %p343 = scmp.eq.s32.totalorder %s20, 0
    %p344 = por %p342, %p343
    %p345 = scmp.ne.s32.totalorder %s334, %s337
    %p346 = scmp.eq.s32.totalorder %s25, 1
    %p347 = por %p345, %p346
    %p348 = scmp.ne.s32.totalorder %s337, %s338
    %p349 = scmp.eq.s32.totalorder %s25, 0
    %p350 = por %p348, %p349
    %p351 = scmp.ne.s32.totalorder %s337, %s338
    %p352 = scmp.eq.s32.totalorder %s26, 1
    %p353 = por %p351, %p352
    %p355 = scmp.ne.s32.totalorder %s338, %s354
    %p356 = scmp.eq.s32.totalorder %s26, 0
    %p357 = por %p355, %p356
    %p358 = scmp.le.s32.totalorder 1, %s20
    %p359 = scmp.lt.s32.totalorder %s20, 3
    %p360 = pnand %p358, %p359
    %p361 = pneg %p360
    // Predicated region
    $region9: #{tpu_custom_call.1} parent=5 // pred_check
      _
    $region10: #{tpu_custom_call.1} parent=5 // pred_check_branch
      %363 = sbr.rel (%p360) target = $region12
    $region11: #{tpu_custom_call.1} parent=5 // pred_region
      %s364 = ssub.s32 %s20, 1
      // Predicated region
      $region13: #{tpu_custom_call.1} parent=11 // pred_check
        %p365 = pneg %p93
      $region14: #{tpu_custom_call.1} parent=11 // pred_check_branch
        %367 = sbr.rel (%p365) target = $region16
      $region15: #{tpu_custom_call.1} parent=11 // pred_region
        _
      $region16: #{tpu_custom_call.1} parent=11 // pred_fallthru
        _
      // Predicated region
      $region17: #{tpu_custom_call.1} parent=11 // pred_check
        %p368 = pneg %p114
      $region18: #{tpu_custom_call.1} parent=11 // pred_check_branch
        %370 = sbr.rel (%p368) target = $region20
      $region19: #{tpu_custom_call.1} parent=11 // pred_region
        _
      $region20: #{tpu_custom_call.1} parent=11 // pred_fallthru
        _
      // Predicated region
      $region21: #{tpu_custom_call.1} parent=11 // pred_check
        %p371 = pneg %p135
      $region22: #{tpu_custom_call.1} parent=11 // pred_check_branch
        %373 = sbr.rel (%p371) target = $region24
      $region23: #{tpu_custom_call.1} parent=11 // pred_region
        _
      $region24: #{tpu_custom_call.1} parent=11 // pred_fallthru
        _
      // Predicated region
      $region25: #{tpu_custom_call.1} parent=11 // pred_check
        %p374 = pneg %p156
      $region26: #{tpu_custom_call.1} parent=11 // pred_check_branch
        %376 = sbr.rel (%p374) target = $region28
      $region27: #{tpu_custom_call.1} parent=11 // pred_region
        _
      $region28: #{tpu_custom_call.1} parent=11 // pred_fallthru
        _
      // Predicated region
      $region29: #{tpu_custom_call.1} parent=11 // pred_check
        %p377 = pneg %p177
      $region30: #{tpu_custom_call.1} parent=11 // pred_check_branch
        %379 = sbr.rel (%p377) target = $region32
      $region31: #{tpu_custom_call.1} parent=11 // pred_region
        _
      $region32: #{tpu_custom_call.1} parent=11 // pred_fallthru
        _
      // Predicated region
      $region33: #{tpu_custom_call.1} parent=11 // pred_check
        %p380 = pneg %p198
      $region34: #{tpu_custom_call.1} parent=11 // pred_check_branch
        %382 = sbr.rel (%p380) target = $region36
      $region35: #{tpu_custom_call.1} parent=11 // pred_region
        _
      $region36: #{tpu_custom_call.1} parent=11 // pred_fallthru
        _
      // Predicated region
      $region37: #{tpu_custom_call.1} parent=11 // pred_check
        %p383 = pneg %p219
      $region38: #{tpu_custom_call.1} parent=11 // pred_check_branch
        %385 = sbr.rel (%p383) target = $region40
      $region39: #{tpu_custom_call.1} parent=11 // pred_region
        _
      $region40: #{tpu_custom_call.1} parent=11 // pred_fallthru
        _
      // Predicated region
      $region41: #{tpu_custom_call.1} parent=11 // pred_check
        %p386 = pneg %p240
      $region42: #{tpu_custom_call.1} parent=11 // pred_check_branch
        %388 = sbr.rel (%p386) target = $region44
      $region43: #{tpu_custom_call.1} parent=11 // pred_region
        _
      $region44: #{tpu_custom_call.1} parent=11 // pred_fallthru
        _
      // Predicated region
      $region45: #{tpu_custom_call.1} parent=11 // pred_check
        %p389 = pneg %p261
      $region46: #{tpu_custom_call.1} parent=11 // pred_check_branch
        %391 = sbr.rel (%p389) target = $region48
      $region47: #{tpu_custom_call.1} parent=11 // pred_region
        _
      $region48: #{tpu_custom_call.1} parent=11 // pred_fallthru
        _
      // Predicated region
      $region49: #{tpu_custom_call.1} parent=11 // pred_check
        %p392 = pneg %p282
      $region50: #{tpu_custom_call.1} parent=11 // pred_check_branch
        %394 = sbr.rel (%p392) target = $region52
      $region51: #{tpu_custom_call.1} parent=11 // pred_region
        _
      $region52: #{tpu_custom_call.1} parent=11 // pred_fallthru
        _
      // Predicated region
      $region53: #{tpu_custom_call.1} parent=11 // pred_check
        %p395 = pneg %p303
      $region54: #{tpu_custom_call.1} parent=11 // pred_check_branch
        %397 = sbr.rel (%p395) target = $region56
      $region55: #{tpu_custom_call.1} parent=11 // pred_region
        _
      $region56: #{tpu_custom_call.1} parent=11 // pred_fallthru
        _
      // Predicated region
      $region57: #{tpu_custom_call.1} parent=11 // pred_check
        %p398 = pneg %p324
      $region58: #{tpu_custom_call.1} parent=11 // pred_check_branch
        %400 = sbr.rel (%p398) target = $region60
      $region59: #{tpu_custom_call.1} parent=11 // pred_region
        _
      $region60: #{tpu_custom_call.1} parent=11 // pred_fallthru
        _
    $region12: #{tpu_custom_call.1} parent=5 // pred_fallthru
      _
    %p401 = scmp.lt.s32.totalorder %s20, 2
    // Predicated region
    $region61: #{tpu_custom_call.1} parent=5 // pred_check
      %p402 = pneg %p401
    $region62: #{tpu_custom_call.1} parent=5 // pred_check_branch
      %404 = sbr.rel (%p402) target = $region64
    $region63: #{tpu_custom_call.1} parent=5 // pred_region
      // Predicated region
      $region65: #{tpu_custom_call.1} parent=63 // pred_check
        %p405 = pneg %p40
      $region66: #{tpu_custom_call.1} parent=63 // pred_check_branch
        %407 = sbr.rel (%p405) target = $region68
      $region67: #{tpu_custom_call.1} parent=63 // pred_region
        %p408 = scmp.lt.s32.totalorder %s20, 1
        %s409 = scalar_select %p408, %s20, 1
        %s410 = smul.addr %s409, 8
        %s411 = scalar_lea.vmem %s0, %s410
      $region68: #{tpu_custom_call.1} parent=63 // pred_fallthru
        _
      // Predicated region
      $region69: #{tpu_custom_call.1} parent=63 // pred_check
        %p412 = pneg %p66
      $region70: #{tpu_custom_call.1} parent=63 // pred_check_branch
        %414 = sbr.rel (%p412) target = $region72
      $region71: #{tpu_custom_call.1} parent=63 // pred_region
        %p415 = scmp.lt.s32.totalorder %s20, 1
        %s416 = scalar_select %p415, %s20, 1
        %s417 = smul.addr %s416, 3
        %s418 = smul.addr %s417, 8
        %s419 = scalar_lea.vmem %s1, %s418
      $region72: #{tpu_custom_call.1} parent=63 // pred_fallthru
        _
    $region64: #{tpu_custom_call.1} parent=5 // pred_fallthru
      _
    %p420 = scmp.le.s32.totalorder 1, %s20
    %p421 = scmp.lt.s32.totalorder %s20, 3
    %p422 = pnand %p420, %p421
    %p423 = pneg %p422
    // Predicated region
    $region73: #{tpu_custom_call.1} parent=5 // pred_check
      _
    $region74: #{tpu_custom_call.1} parent=5 // pred_check_branch
      %425 = sbr.rel (%p422) target = $region76
    $region75: #{tpu_custom_call.1} parent=5 // pred_region
      %s426 = ssub.s32 %s20, 1
      %p427 = scmp.lt.s32.totalorder %s25, 1
      %s428 = scalar_select %p427, %s25, 1
      %s429 = smul.addr %s428, 8
      %s430 = scalar_lea.vmem %s0, %s429
      %p431 = pneg %p46
      %p432 = pneg %p43
      %p433 = scmp.lt.s32.totalorder %s25, 1
      %s434 = scalar_select %p433, %s25, 1
      %s435 = smul.addr %s434, 3
      %s436 = smul.addr %s435, 8
      %s437 = scalar_lea.vmem %s1, %s436
      %p438 = pneg %p72
      %p439 = pneg %p69
      %p440 = pneg %p93
      %p441 = pneg %p90
      %p442 = pneg %p114
      %p443 = pneg %p111
      %p444 = pneg %p135
      %p445 = pneg %p132
      %p446 = pneg %p156
      %p447 = pneg %p153
      %p448 = pneg %p177
      %p449 = pneg %p174
      %p450 = pneg %p198
      %p451 = pneg %p195
      %p452 = pneg %p219
      %p453 = pneg %p216
      %p454 = pneg %p240
      %p455 = pneg %p237
      %p456 = pneg %p261
      %p457 = pneg %p258
      %p458 = pneg %p282
      %p459 = pneg %p279
      %p460 = pneg %p303
      %p461 = pneg %p300
      %p462 = pneg %p324
      %p463 = pneg %p321
      %p464 = pneg %p350
      %p465 = pneg %p347
      %p466 = scmp.lt.s32.totalorder %s25, 1
      %s467 = scalar_select %p466, %s25, 1
      %s468 = smul.addr %s467, 8
      %s469 = scalar_lea.vmem %s14, %s468
      %p470 = scmp.lt.s32.totalorder %s25, 1
      %s471 = scalar_select %p470, %s25, 1
      %s472 = smul.addr %s471, 8
      %s473 = scalar_lea.vmem %s0, %s472
      %p474 = scmp.lt.s32.totalorder %s25, 1
      %s475 = scalar_select %p474, %s25, 1
      %s476 = smul.addr %s475, 3
      %s477 = smul.addr %s476, 8
      %s478 = scalar_lea.vmem %s1, %s477
      %p479 = scmp.lt.s32.totalorder %s25, 1
      %s480 = scalar_select %p479, %s25, 1
      %s481 = smul.addr %s480, 8
      %s482 = scalar_lea.vmem %s14, %s481
      %v483 = vld [vmem:[%s473] sm:$0x1f]
      %v484 = vld [vmem:[%s478] sm:$0xff]
      %v485 = vld [vmem:[%s478 + $0x8] sm:$0xff]
      %v486 = vld [vmem:[%s478 + $0x10] sm:$0xf]
      %v487 = vld [vmem:[%s2] sm:$0xff]
      %v488 = vld [vmem:[%s2 + $0x8] sm:$0xff]
      %v489 = vld [vmem:[%s2 + $0x10] sm:$0xff]
      %v490 = vld [vmem:[%s2 + $0x18] sm:$0xff]
      %v491 = vld [vmem:[%s2 + $0x20] sm:$0xff]
      %v492 = vld [vmem:[%s3] sm:$0x1f]
      %v493 = vld [vmem:[%s4] sm:$0xff]
      %v494 = vld [vmem:[%s6] sm:$0xff]
      %v495 = vld [vmem:[%s6 + $0x8] sm:$0xff]
      %v496 = vld [vmem:[%s6 + $0x10] sm:$0xff]
      %v497 = vld [vmem:[%s6 + $0x18] sm:$0xff]
      %v498 = vld [vmem:[%s8] sm:$0xff]
      %v499 = vld [vmem:[%s8 + $0x8] sm:$0xff]
      %v500 = vld [vmem:[%s8 + $0x10] sm:$0xff]
      %v501 = vld [vmem:[%s8 + $0x18] sm:$0xff]
      %v502 = vld [vmem:[%s8 + $0x20] sm:$0xf]
      %v503 = vld [vmem:[%s10] sm:$0xff]
      %v504 = vld [vmem:[%s10 + $0x8] sm:$0xff]
      %v505 = vld [vmem:[%s10 + $0x10] sm:$0xff]
      %v506 = vld [vmem:[%s10 + $0x18] sm:$0xff]
      %v507 = vld [vmem:[%s12] sm:$0xff]
      %v508 = vld [vmem:[%s12 + $0x8] sm:$0xff]
      %v509 = vld [vmem:[%s12 + $0x10] sm:$0xff]
      %v510 = vld [vmem:[%s12 + $0x18] sm:$0xff]
      %v511 = vld [vmem:[%s5] sm:$0x1]
      %v513 = vlaneseq
      %v514 = vshrl.u32 %v513, 7
      %v515 = vsub.s32 0, %v514
      %v516 = vrot.slane %v511, %v515
      %v518 = vld [vmem:[%s7] sm:$0x1]
      %v520 = vlaneseq
      %v521 = vshrl.u32 %v520, 7
      %v522 = vsub.s32 0, %v521
      %v523 = vrot.slane %v518, %v522
      %v525 = vld [vmem:[%s9] sm:$0x1]
      %v527 = vlaneseq
      %v528 = vshrl.u32 %v527, 7
      %v529 = vsub.s32 0, %v528
      %v530 = vrot.slane %v525, %v529
      %v532 = vld [vmem:[%s11] sm:$0x1]
      %v534 = vlaneseq
      %v535 = vshrl.u32 %v534, 7
      %v536 = vsub.s32 0, %v535
      %v537 = vrot.slane %v532, %v536
      %v539 = vld [vmem:[%s13] sm:$0x1]
      %v541 = vlaneseq
      %v542 = vshrl.u32 %v541, 7
      %v543 = vsub.s32 0, %v542
      %v544 = vrot.slane %v539, %v543
      %vm546 = vcmask 39936
      %v548 = vsel %vm546, %v487, 0
      %v551 = vsel %vm546, %v488, 0
      %v554 = vsel %vm546, %v489, 0
      %v557 = vsel %vm546, %v490, 0
      %v560 = vsel %vm546, %v491, 0
      %vm562 = vcmask 1044480
      %v564 = vsel %vm562, %v483, 0
      %566 = vmatprep.subr.mxu0 0.0
      %567 = vmatpush1.msra.mxu0 0.0
      %568 = vmatprep.subr.mxu0 0.0
      %569 = vmatpush1.msra.mxu0 0.0
      %570 = vmatprep.subr.mxu0 0.0
      %571 = vmatpush1.msra.mxu0 0.0
      %572 = vmatprep.subr.mxu0 0.0
      %573 = vmatpush1.msra.mxu0 0.0
      %574 = vmatprep.subr.mxu0 0.0
      %575 = vmatpush1.msra.mxu0 0.0
      %576 = vmatprep.subr.mxu0 0.0
      %577 = vmatpush1.msra.mxu0 0.0
      %578 = vmatprep.subr.mxu0 0.0
      %579 = vmatpush1.msra.mxu0 0.0
      %580 = vmatprep.subr.mxu0 0.0
      %581 = vmatpush1.msra.mxu0 0.0
      %582 = vmatprep.subr.mxu0 0.0
      %583 = vmatpush1.msra.mxu0 0.0
      %584 = vmatprep.subr.mxu0 0.0
      %585 = vmatpush1.msra.mxu0 0.0
      %586 = vmatprep.subr.mxu0 0.0
      %587 = vmatpush1.msra.mxu0 0.0
      %588 = vmatprep.subr.mxu0 0.0
      %589 = vmatpush1.msra.mxu0 0.0
      %590 = vmatprep.subr.mxu0 0.0
      %591 = vmatpush1.msra.mxu0 0.0
      %592 = vmatprep.subr.mxu0 0.0
      %593 = vmatpush1.msra.mxu0 0.0
      %594 = vmatprep.subr.mxu0 0.0
      %595 = vmatpush1.msra.mxu0 0.0
      %596 = vmatprep.subr.mxu0 0.0
      %597 = vmatpush1.msra.mxu0 %v564
      %598 = vmatprep.subr.mxu0 0.0
      %599 = vmatpush2.msra.mxu0 0.0
      %600 = vmatprep.subr.mxu0 0.0
      %601 = vmatpush2.msra.mxu0 0.0
      %602 = vmatprep.subr.mxu0 0.0
      %603 = vmatpush2.msra.mxu0 0.0
      %604 = vmatprep.subr.mxu0 0.0
      %605 = vmatpush2.msra.mxu0 0.0
      %606 = vmatprep.subr.mxu0 0.0
      %607 = vmatpush2.msra.mxu0 0.0
      %608 = vmatprep.subr.mxu0 0.0
      %609 = vmatpush2.msra.mxu0 0.0
      %610 = vmatprep.subr.mxu0 0.0
      %611 = vmatpush2.msra.mxu0 0.0
      %612 = vmatprep.subr.mxu0 0.0
      %613 = vmatpush2.msra.mxu0 0.0
      %614 = vmatprep.subr.mxu0 0.0
      %615 = vmatpush2.msra.mxu0 0.0
      %616 = vmatprep.subr.mxu0 0.0
      %617 = vmatpush2.msra.mxu0 0.0
      %618 = vmatprep.subr.mxu0 0.0
      %619 = vmatpush2.msra.mxu0 0.0
      %620 = vmatprep.subr.mxu0 0.0
      %621 = vmatpush2.msra.mxu0 0.0
      %622 = vmatprep.subr.mxu0 0.0
      %623 = vmatpush2.msra.mxu0 0.0
      %624 = vmatprep.subr.mxu0 0.0
      %625 = vmatpush2.msra.mxu0 0.0
      %626 = vmatprep.subr.mxu0 0.0
      %627 = vmatpush2.msra.mxu0 0.0
      %628 = vmatprep.subr.mxu0 0.0
      %629 = vmatpush2.msra.mxu0 0.0
      %630 = vmatprep.mubr.f32.mxu0 0.0
      %631 = vmatmul.mubr.f32.gmra.mxu0 %v548
      %v632 = vpop.f32.mrf.mxu0
      %v633 = vadd.f32 0.0, %v632
      %v634 = vpop.f32.mrf.mxu0
      %635 = vmatprep.mubr.f32.mxu0 0.0
      %636 = vmatmul.mubr.f32.gmra.mxu0 %v551
      %v637 = vpop.f32.mrf.mxu0
      %v638 = vadd.f32 0.0, %v637
      %v639 = vpop.f32.mrf.mxu0
      %640 = vmatprep.mubr.f32.mxu0 0.0
      %641 = vmatmul.mubr.f32.gmra.mxu0 %v554
      %v642 = vpop.f32.mrf.mxu0
      %v643 = vadd.f32 0.0, %v642
      %v644 = vpop.f32.mrf.mxu0
      %645 = vmatprep.mubr.f32.mxu0 0.0
      %646 = vmatmul.mubr.f32.gmra.mxu0 %v557
      %v647 = vpop.f32.mrf.mxu0
      %v648 = vadd.f32 0.0, %v647
      %v649 = vpop.f32.mrf.mxu0
      %650 = vmatprep.mubr.f32.mxu0 0.0
      %651 = vmatmul.mubr.f32.gmra.mxu0 %v560
      %v652 = vpop.f32.mrf.mxu0
      %v653 = vadd.f32 0.0, %v652
      %v654 = vpop.f32.mrf.mxu0
      %655 = vdwg.mxu0
      %vm659 = vcmask 1043456
      %v660 = vrot.slane %v643, 4
      %v661 = vrot.slane %v648, 4
      %v662 = vsel %vm659, %v660, %v661
      %v663 = vrot.slane %v653, 4
      %v664 = vsel %vm659, %v661, %v663
      %665 = vrot.lane.b32.xlu0 %v662, 4
      %v666 = vpop.permute.xlu0 %665
      %667 = vrot.lane.b32.xlu0 %v664, 4
      %v668 = vpop.permute.xlu0 %667
      %669 = vrot.lane.b32.xlu0 %v663, 4
      %v670 = vpop.permute.xlu0 %669
      %vm674 = vcmask 31744
      %v675 = vsel %vm674, %v633, %v666
      %v676 = vsel %vm674, %v638, %v668
      %v677 = vsel %vm674, %v643, %v670
      %vm678 = vcmask 64512
      %v680 = vsel %vm678, %v675, 0
      %v683 = vsel %vm678, %v676, 0
      %v686 = vsel %vm678, %v677, 0
      %688 = vmatprep.subr.mxu0 0.0
      %689 = vmatpush1.msra.mxu0 0.0
      %690 = vmatprep.subr.mxu0 0.0
      %691 = vmatpush1.msra.mxu0 0.0
      %692 = vmatprep.subr.mxu0 0.0
      %693 = vmatpush1.msra.mxu0 0.0
      %694 = vmatprep.subr.mxu0 0.0
      %695 = vmatpush1.msra.mxu0 0.0
      %696 = vmatprep.subr.mxu0 0.0
      %697 = vmatpush1.msra.mxu0 0.0
      %698 = vmatprep.subr.mxu0 0.0
      %699 = vmatpush1.msra.mxu0 0.0
      %700 = vmatprep.subr.mxu0 0.0
      %701 = vmatpush1.msra.mxu0 0.0
      %702 = vmatprep.subr.mxu0 0.0
      %703 = vmatpush1.msra.mxu0 0.0
      %704 = vmatprep.subr.mxu0 0.0
      %705 = vmatpush1.msra.mxu0 0.0
      %706 = vmatprep.subr.mxu0 0.0
      %707 = vmatpush1.msra.mxu0 0.0
      %708 = vmatprep.subr.mxu0 0.0
      %709 = vmatpush1.msra.mxu0 0.0
      %710 = vmatprep.subr.mxu0 0.0
      %711 = vmatpush1.msra.mxu0 0.0
      %712 = vmatprep.subr.mxu0 0.0
      %713 = vmatpush1.msra.mxu0 0.0
      %714 = vmatprep.subr.mxu0 0.0
      %715 = vmatpush1.msra.mxu0 0.0
      %716 = vmatprep.subr.mxu0 0.0
      %717 = vmatpush1.msra.mxu0 0.0
      %718 = vmatprep.subr.mxu0 0.0
      %719 = vmatpush1.msra.mxu0 %v493
      %720 = vmatprep.subr.mxu0 0.0
      %721 = vmatpush2.msra.mxu0 0.0
      %722 = vmatprep.subr.mxu0 0.0
      %723 = vmatpush2.msra.mxu0 0.0
      %724 = vmatprep.subr.mxu0 0.0
      %725 = vmatpush2.msra.mxu0 0.0
      %726 = vmatprep.subr.mxu0 0.0
      %727 = vmatpush2.msra.mxu0 0.0
      %728 = vmatprep.subr.mxu0 0.0
      %729 = vmatpush2.msra.mxu0 0.0
      %730 = vmatprep.subr.mxu0 0.0
      %731 = vmatpush2.msra.mxu0 0.0
      %732 = vmatprep.subr.mxu0 0.0
      %733 = vmatpush2.msra.mxu0 0.0
      %734 = vmatprep.subr.mxu0 0.0
      %735 = vmatpush2.msra.mxu0 0.0
      %736 = vmatprep.subr.mxu0 0.0
      %737 = vmatpush2.msra.mxu0 0.0
      %738 = vmatprep.subr.mxu0 0.0
      %739 = vmatpush2.msra.mxu0 0.0
      %740 = vmatprep.subr.mxu0 0.0
      %741 = vmatpush2.msra.mxu0 0.0
      %742 = vmatprep.subr.mxu0 0.0
      %743 = vmatpush2.msra.mxu0 0.0
      %744 = vmatprep.subr.mxu0 0.0
      %745 = vmatpush2.msra.mxu0 0.0
      %746 = vmatprep.subr.mxu0 0.0
      %747 = vmatpush2.msra.mxu0 0.0
      %748 = vmatprep.subr.mxu0 0.0
      %749 = vmatpush2.msra.mxu0 0.0
      %750 = vmatprep.subr.mxu0 0.0
      %751 = vmatpush2.msra.mxu0 0.0
      %752 = vmatprep.mubr.f32.mxu0 0.0
      %753 = vmatmul.mubr.f32.gmra.mxu0 %v680
      %v754 = vpop.f32.mrf.mxu0
      %v755 = vadd.f32 %v516, %v754
      %v756 = vpop.f32.mrf.mxu0
      %757 = vmatprep.mubr.f32.mxu0 0.0
      %758 = vmatmul.mubr.f32.gmra.mxu0 %v683
      %v759 = vpop.f32.mrf.mxu0
      %v760 = vadd.f32 %v516, %v759
      %v761 = vpop.f32.mrf.mxu0
      %762 = vmatprep.mubr.f32.mxu0 0.0
      %763 = vmatmul.mubr.f32.gmra.mxu0 %v686
      %v764 = vpop.f32.mrf.mxu0
      %v765 = vadd.f32 %v516, %v764
      %v766 = vpop.f32.mrf.mxu0
      %767 = vdwg.mxu0
      %v768 = vmax.f32 %v755, 0.0
      %v769 = vmax.f32 %v760, 0.0
      %v770 = vmax.f32 %v765, 0.0
      %vm771 = vcmask 261120
      %v773 = vsel %vm771, %v768, 0
      %v776 = vsel %vm771, %v769, 0
      %v779 = vsel %vm771, %v770, 0
      %781 = vmatprep.subr.mxu0 0.0
      %782 = vmatpush1.msra.mxu0 0.0
      %783 = vmatprep.subr.mxu0 0.0
      %784 = vmatpush1.msra.mxu0 0.0
      %785 = vmatprep.subr.mxu0 0.0
      %786 = vmatpush1.msra.mxu0 0.0
      %787 = vmatprep.subr.mxu0 0.0
      %788 = vmatpush1.msra.mxu0 0.0
      %789 = vmatprep.subr.mxu0 0.0
      %790 = vmatpush1.msra.mxu0 0.0
      %791 = vmatprep.subr.mxu0 0.0
      %792 = vmatpush1.msra.mxu0 0.0
      %793 = vmatprep.subr.mxu0 0.0
      %794 = vmatpush1.msra.mxu0 0.0
      %795 = vmatprep.subr.mxu0 0.0
      %796 = vmatpush1.msra.mxu0 0.0
      %797 = vmatprep.subr.mxu0 0.0
      %798 = vmatpush1.msra.mxu0 0.0
      %799 = vmatprep.subr.mxu0 0.0
      %800 = vmatpush1.msra.mxu0 0.0
      %801 = vmatprep.subr.mxu0 0.0
      %802 = vmatpush1.msra.mxu0 0.0
      %803 = vmatprep.subr.mxu0 0.0
      %804 = vmatpush1.msra.mxu0 0.0
      %805 = vmatprep.subr.mxu0 0.0
      %806 = vmatpush1.msra.mxu0 %v497
      %807 = vmatprep.subr.mxu0 0.0
      %808 = vmatpush1.msra.mxu0 %v496
      %809 = vmatprep.subr.mxu0 0.0
      %810 = vmatpush1.msra.mxu0 %v495
      %811 = vmatprep.subr.mxu0 0.0
      %812 = vmatpush1.msra.mxu0 %v494
      %813 = vmatprep.subr.mxu0 0.0
      %814 = vmatpush2.msra.mxu0 0.0
      %815 = vmatprep.subr.mxu0 0.0
      %816 = vmatpush2.msra.mxu0 0.0
      %817 = vmatprep.subr.mxu0 0.0
      %818 = vmatpush2.msra.mxu0 0.0
      %819 = vmatprep.subr.mxu0 0.0
      %820 = vmatpush2.msra.mxu0 0.0
      %821 = vmatprep.subr.mxu0 0.0
      %822 = vmatpush2.msra.mxu0 0.0
      %823 = vmatprep.subr.mxu0 0.0
      %824 = vmatpush2.msra.mxu0 0.0
      %825 = vmatprep.subr.mxu0 0.0
      %826 = vmatpush2.msra.mxu0 0.0
      %827 = vmatprep.subr.mxu0 0.0
      %828 = vmatpush2.msra.mxu0 0.0
      %829 = vmatprep.subr.mxu0 0.0
      %830 = vmatpush2.msra.mxu0 0.0
      %831 = vmatprep.subr.mxu0 0.0
      %832 = vmatpush2.msra.mxu0 0.0
      %833 = vmatprep.subr.mxu0 0.0
      %834 = vmatpush2.msra.mxu0 0.0
      %835 = vmatprep.subr.mxu0 0.0
      %836 = vmatpush2.msra.mxu0 0.0
      %837 = vmatprep.subr.mxu0 0.0
      %838 = vmatpush2.msra.mxu0 0.0
      %839 = vmatprep.subr.mxu0 0.0
      %840 = vmatpush2.msra.mxu0 0.0
      %841 = vmatprep.subr.mxu0 0.0
      %842 = vmatpush2.msra.mxu0 0.0
      %843 = vmatprep.subr.mxu0 0.0
      %844 = vmatpush2.msra.mxu0 0.0
      %845 = vmatprep.mubr.f32.mxu0 0.0
      %846 = vmatmul.mubr.f32.gmra.mxu0 %v773
      %v847 = vpop.f32.mrf.mxu0
      %v848 = vadd.f32 %v523, %v847
      %v849 = vpop.f32.mrf.mxu0
      %850 = vmatprep.mubr.f32.mxu0 0.0
      %851 = vmatmul.mubr.f32.gmra.mxu0 %v776
      %v852 = vpop.f32.mrf.mxu0
      %v853 = vadd.f32 %v523, %v852
      %v854 = vpop.f32.mrf.mxu0
      %855 = vmatprep.mubr.f32.mxu0 0.0
      %856 = vmatmul.mubr.f32.gmra.mxu0 %v779
      %v857 = vpop.f32.mrf.mxu0
      %v858 = vadd.f32 %v523, %v857
      %v859 = vpop.f32.mrf.mxu0
      %860 = vdwg.mxu0
      %v861 = vmax.f32 %v848, 0.0
      %v862 = vmax.f32 %v853, 0.0
      %v863 = vmax.f32 %v858, 0.0
      %865 = vset.pattern.permute.xlu0 0
      %866 = vperm.xlu0 %865, %v484
      %v867 = vpop.permute.xlu0 %866
      %870 = vset.pattern.permute.xlu0 0
      %871 = vperm.xlu0 %870, %v485
      %v872 = vpop.permute.xlu0 %871
      %875 = vset.pattern.permute.xlu0 0
      %876 = vperm.xlu0 %875, %v486
      %v877 = vpop.permute.xlu0 %876
      %v879 = vmul.f32 %v861, %v867
      %v880 = vmul.f32 %v862, %v872
      %v881 = vmul.f32 %v863, %v877
      %vm882 = vcmask 162816
      %v884 = vsel %vm882, %v492, 0
      %v887 = vsel %vm659, %v881, 0
      %889 = vmatprep.subr.mxu0 0.0
      %890 = vmatpush1.msra.mxu0 0.0
      %891 = vmatprep.subr.mxu0 0.0
      %892 = vmatpush1.msra.mxu0 0.0
      %893 = vmatprep.subr.mxu0 0.0
      %894 = vmatpush1.msra.mxu0 0.0
      %895 = vmatprep.subr.mxu0 0.0
      %896 = vmatpush1.msra.mxu0 0.0
      %897 = vmatprep.subr.mxu0 0.0
      %898 = vmatpush1.msra.mxu0 0.0
      %899 = vmatprep.subr.mxu0 0.0
      %900 = vmatpush1.msra.mxu0 0.0
      %901 = vmatprep.subr.mxu0 0.0
      %902 = vmatpush1.msra.mxu0 0.0
      %903 = vmatprep.subr.mxu0 0.0
      %904 = vmatpush1.msra.mxu0 0.0
      %905 = vmatprep.subr.mxu0 0.0
      %906 = vmatpush1.msra.mxu0 0.0
      %907 = vmatprep.subr.mxu0 0.0
      %908 = vmatpush1.msra.mxu0 0.0
      %909 = vmatprep.subr.mxu0 0.0
      %910 = vmatpush1.msra.mxu0 0.0
      %911 = vmatprep.subr.mxu0 0.0
      %912 = vmatpush1.msra.mxu0 0.0
      %913 = vmatprep.subr.mxu0 0.0
      %914 = vmatpush1.msra.mxu0 0.0
      %915 = vmatprep.subr.mxu0 0.0
      %916 = vmatpush1.msra.mxu0 %v887
      %917 = vmatprep.subr.mxu0 0.0
      %918 = vmatpush1.msra.mxu0 %v880
      %919 = vmatprep.subr.mxu0 0.0
      %920 = vmatpush1.msra.mxu0 %v879
      %921 = vmatprep.subr.mxu0 0.0
      %922 = vmatpush2.msra.mxu0 0.0
      %923 = vmatprep.subr.mxu0 0.0
      %924 = vmatpush2.msra.mxu0 0.0
      %925 = vmatprep.subr.mxu0 0.0
      %926 = vmatpush2.msra.mxu0 0.0
      %927 = vmatprep.subr.mxu0 0.0
      %928 = vmatpush2.msra.mxu0 0.0
      %929 = vmatprep.subr.mxu0 0.0
      %930 = vmatpush2.msra.mxu0 0.0
      %931 = vmatprep.subr.mxu0 0.0
      %932 = vmatpush2.msra.mxu0 0.0
      %933 = vmatprep.subr.mxu0 0.0
      %934 = vmatpush2.msra.mxu0 0.0
      %935 = vmatprep.subr.mxu0 0.0
      %936 = vmatpush2.msra.mxu0 0.0
      %937 = vmatprep.subr.mxu0 0.0
      %938 = vmatpush2.msra.mxu0 0.0
      %939 = vmatprep.subr.mxu0 0.0
      %940 = vmatpush2.msra.mxu0 0.0
      %941 = vmatprep.subr.mxu0 0.0
      %942 = vmatpush2.msra.mxu0 0.0
      %943 = vmatprep.subr.mxu0 0.0
      %944 = vmatpush2.msra.mxu0 0.0
      %945 = vmatprep.subr.mxu0 0.0
      %946 = vmatpush2.msra.mxu0 0.0
      %947 = vmatprep.subr.mxu0 0.0
      %948 = vmatpush2.msra.mxu0 0.0
      %949 = vmatprep.subr.mxu0 0.0
      %950 = vmatpush2.msra.mxu0 0.0
      %951 = vmatprep.subr.mxu0 0.0
      %952 = vmatpush2.msra.mxu0 0.0
      %953 = vmatprep.mubr.f32.mxu0 0.0
      %954 = vmatmul.mubr.f32.gmra.mxu0 %v884
      %v955 = vpop.f32.mrf.mxu0
      %v956 = vadd.f32 0.0, %v955
      %v957 = vpop.f32.mrf.mxu0
      %958 = vdwg.mxu0
      %960 = vrot.lane.b32.xlu0 %v956, 4
      %v961 = vpop.permute.xlu0 %960
      %v963 = vsel %vm674, %v483, %v961
      %vm964 = vcmask 293888
      %v966 = vsel %vm964, %v963, 0
      %v969 = vsel %vm659, %v502, 0
      %971 = vmatprep.subr.mxu0 0.0
      %972 = vmatpush1.msra.mxu0 0.0
      %973 = vmatprep.subr.mxu0 0.0
      %974 = vmatpush1.msra.mxu0 0.0
      %975 = vmatprep.subr.mxu0 0.0
      %976 = vmatpush1.msra.mxu0 0.0
      %977 = vmatprep.subr.mxu0 0.0
      %978 = vmatpush1.msra.mxu0 0.0
      %979 = vmatprep.subr.mxu0 0.0
      %980 = vmatpush1.msra.mxu0 0.0
      %981 = vmatprep.subr.mxu0 0.0
      %982 = vmatpush1.msra.mxu0 0.0
      %983 = vmatprep.subr.mxu0 0.0
      %984 = vmatpush1.msra.mxu0 0.0
      %985 = vmatprep.subr.mxu0 0.0
      %986 = vmatpush1.msra.mxu0 0.0
      %987 = vmatprep.subr.mxu0 0.0
      %988 = vmatpush1.msra.mxu0 0.0
      %989 = vmatprep.subr.mxu0 0.0
      %990 = vmatpush1.msra.mxu0 0.0
      %991 = vmatprep.subr.mxu0 0.0
      %992 = vmatpush1.msra.mxu0 0.0
      %993 = vmatprep.subr.mxu0 0.0
      %994 = vmatpush1.msra.mxu0 %v969
      %995 = vmatprep.subr.mxu0 0.0
      %996 = vmatpush1.msra.mxu0 %v501
      %997 = vmatprep.subr.mxu0 0.0
      %998 = vmatpush1.msra.mxu0 %v500
      %999 = vmatprep.subr.mxu0 0.0
      %1000 = vmatpush1.msra.mxu0 %v499
      %1001 = vmatprep.subr.mxu0 0.0
      %1002 = vmatpush1.msra.mxu0 %v498
      %1003 = vmatprep.subr.mxu0 0.0
      %1004 = vmatpush2.msra.mxu0 0.0
      %1005 = vmatprep.subr.mxu0 0.0
      %1006 = vmatpush2.msra.mxu0 0.0
      %1007 = vmatprep.subr.mxu0 0.0
      %1008 = vmatpush2.msra.mxu0 0.0
      %1009 = vmatprep.subr.mxu0 0.0
      %1010 = vmatpush2.msra.mxu0 0.0
      %1011 = vmatprep.subr.mxu0 0.0
      %1012 = vmatpush2.msra.mxu0 0.0
      %1013 = vmatprep.subr.mxu0 0.0
      %1014 = vmatpush2.msra.mxu0 0.0
      %1015 = vmatprep.subr.mxu0 0.0
      %1016 = vmatpush2.msra.mxu0 0.0
      %1017 = vmatprep.subr.mxu0 0.0
      %1018 = vmatpush2.msra.mxu0 0.0
      %1019 = vmatprep.subr.mxu0 0.0
      %1020 = vmatpush2.msra.mxu0 0.0
      %1021 = vmatprep.subr.mxu0 0.0
      %1022 = vmatpush2.msra.mxu0 0.0
      %1023 = vmatprep.subr.mxu0 0.0
      %1024 = vmatpush2.msra.mxu0 0.0
      %1025 = vmatprep.subr.mxu0 0.0
      %1026 = vmatpush2.msra.mxu0 0.0
      %1027 = vmatprep.subr.mxu0 0.0
      %1028 = vmatpush2.msra.mxu0 0.0
      %1029 = vmatprep.subr.mxu0 0.0
      %1030 = vmatpush2.msra.mxu0 0.0
      %1031 = vmatprep.subr.mxu0 0.0
      %1032 = vmatpush2.msra.mxu0 0.0
      %1033 = vmatprep.subr.mxu0 0.0
      %1034 = vmatpush2.msra.mxu0 0.0
      %1035 = vmatprep.mubr.f32.mxu0 0.0
      %1036 = vmatmul.mubr.f32.gmra.mxu0 %v966
      %v1037 = vpop.f32.mrf.mxu0
      %v1038 = vadd.f32 %v530, %v1037
      %v1039 = vpop.f32.mrf.mxu0
      %1040 = vdwg.mxu0
      %v1041 = vmax.f32 %v1038, 0.0
      %v1043 = vsel %vm771, %v1041, 0
      %1045 = vmatprep.subr.mxu0 0.0
      %1046 = vmatpush1.msra.mxu0 0.0
      %1047 = vmatprep.subr.mxu0 0.0
      %1048 = vmatpush1.msra.mxu0 0.0
      %1049 = vmatprep.subr.mxu0 0.0
      %1050 = vmatpush1.msra.mxu0 0.0
      %1051 = vmatprep.subr.mxu0 0.0
      %1052 = vmatpush1.msra.mxu0 0.0
      %1053 = vmatprep.subr.mxu0 0.0
      %1054 = vmatpush1.msra.mxu0 0.0
      %1055 = vmatprep.subr.mxu0 0.0
      %1056 = vmatpush1.msra.mxu0 0.0
      %1057 = vmatprep.subr.mxu0 0.0
      %1058 = vmatpush1.msra.mxu0 0.0
      %1059 = vmatprep.subr.mxu0 0.0
      %1060 = vmatpush1.msra.mxu0 0.0
      %1061 = vmatprep.subr.mxu0 0.0
      %1062 = vmatpush1.msra.mxu0 0.0
      %1063 = vmatprep.subr.mxu0 0.0
      %1064 = vmatpush1.msra.mxu0 0.0
      %1065 = vmatprep.subr.mxu0 0.0
      %1066 = vmatpush1.msra.mxu0 0.0
      %1067 = vmatprep.subr.mxu0 0.0
      %1068 = vmatpush1.msra.mxu0 0.0
      %1069 = vmatprep.subr.mxu0 0.0
      %1070 = vmatpush1.msra.mxu0 %v506
      %1071 = vmatprep.subr.mxu0 0.0
      %1072 = vmatpush1.msra.mxu0 %v505
      %1073 = vmatprep.subr.mxu0 0.0
      %1074 = vmatpush1.msra.mxu0 %v504
      %1075 = vmatprep.subr.mxu0 0.0
      %1076 = vmatpush1.msra.mxu0 %v503
      %1077 = vmatprep.subr.mxu0 0.0
      %1078 = vmatpush2.msra.mxu0 0.0
      %1079 = vmatprep.subr.mxu0 0.0
      %1080 = vmatpush2.msra.mxu0 0.0
      %1081 = vmatprep.subr.mxu0 0.0
      %1082 = vmatpush2.msra.mxu0 0.0
      %1083 = vmatprep.subr.mxu0 0.0
      %1084 = vmatpush2.msra.mxu0 0.0
      %1085 = vmatprep.subr.mxu0 0.0
      %1086 = vmatpush2.msra.mxu0 0.0
      %1087 = vmatprep.subr.mxu0 0.0
      %1088 = vmatpush2.msra.mxu0 0.0
      %1089 = vmatprep.subr.mxu0 0.0
      %1090 = vmatpush2.msra.mxu0 0.0
      %1091 = vmatprep.subr.mxu0 0.0
      %1092 = vmatpush2.msra.mxu0 0.0
      %1093 = vmatprep.subr.mxu0 0.0
      %1094 = vmatpush2.msra.mxu0 0.0
      %1095 = vmatprep.subr.mxu0 0.0
      %1096 = vmatpush2.msra.mxu0 0.0
      %1097 = vmatprep.subr.mxu0 0.0
      %1098 = vmatpush2.msra.mxu0 0.0
      %1099 = vmatprep.subr.mxu0 0.0
      %1100 = vmatpush2.msra.mxu0 0.0
      %1101 = vmatprep.subr.mxu0 0.0
      %1102 = vmatpush2.msra.mxu0 0.0
      %1103 = vmatprep.subr.mxu0 0.0
      %1104 = vmatpush2.msra.mxu0 0.0
      %1105 = vmatprep.subr.mxu0 0.0
      %1106 = vmatpush2.msra.mxu0 0.0
      %1107 = vmatprep.subr.mxu0 0.0
      %1108 = vmatpush2.msra.mxu0 0.0
      %1109 = vmatprep.mubr.f32.mxu0 0.0
      %1110 = vmatmul.mubr.f32.gmra.mxu0 %v1043
      %v1111 = vpop.f32.mrf.mxu0
      %v1112 = vadd.f32 %v537, %v1111
      %v1113 = vpop.f32.mrf.mxu0
      %1114 = vdwg.mxu0
      %v1115 = vmax.f32 %v1112, 0.0
      %v1117 = vsel %vm771, %v1115, 0
      %1119 = vmatprep.subr.mxu0 0.0
      %1120 = vmatpush1.msra.mxu0 0.0
      %1121 = vmatprep.subr.mxu0 0.0
      %1122 = vmatpush1.msra.mxu0 0.0
      %1123 = vmatprep.subr.mxu0 0.0
      %1124 = vmatpush1.msra.mxu0 0.0
      %1125 = vmatprep.subr.mxu0 0.0
      %1126 = vmatpush1.msra.mxu0 0.0
      %1127 = vmatprep.subr.mxu0 0.0
      %1128 = vmatpush1.msra.mxu0 0.0
      %1129 = vmatprep.subr.mxu0 0.0
      %1130 = vmatpush1.msra.mxu0 0.0
      %1131 = vmatprep.subr.mxu0 0.0
      %1132 = vmatpush1.msra.mxu0 0.0
      %1133 = vmatprep.subr.mxu0 0.0
      %1134 = vmatpush1.msra.mxu0 0.0
      %1135 = vmatprep.subr.mxu0 0.0
      %1136 = vmatpush1.msra.mxu0 0.0
      %1137 = vmatprep.subr.mxu0 0.0
      %1138 = vmatpush1.msra.mxu0 0.0
      %1139 = vmatprep.subr.mxu0 0.0
      %1140 = vmatpush1.msra.mxu0 0.0
      %1141 = vmatprep.subr.mxu0 0.0
      %1142 = vmatpush1.msra.mxu0 0.0
      %1143 = vmatprep.subr.mxu0 0.0
      %1144 = vmatpush1.msra.mxu0 %v510
      %1145 = vmatprep.subr.mxu0 0.0
      %1146 = vmatpush1.msra.mxu0 %v509
      %1147 = vmatprep.subr.mxu0 0.0
      %1148 = vmatpush1.msra.mxu0 %v508
      %1149 = vmatprep.subr.mxu0 0.0
      %1150 = vmatpush1.msra.mxu0 %v507
      %1151 = vmatprep.subr.mxu0 0.0
      %1152 = vmatpush2.msra.mxu0 0.0
      %1153 = vmatprep.subr.mxu0 0.0
      %1154 = vmatpush2.msra.mxu0 0.0
      %1155 = vmatprep.subr.mxu0 0.0
      %1156 = vmatpush2.msra.mxu0 0.0
      %1157 = vmatprep.subr.mxu0 0.0
      %1158 = vmatpush2.msra.mxu0 0.0
      %1159 = vmatprep.subr.mxu0 0.0
      %1160 = vmatpush2.msra.mxu0 0.0
      %1161 = vmatprep.subr.mxu0 0.0
      %1162 = vmatpush2.msra.mxu0 0.0
      %1163 = vmatprep.subr.mxu0 0.0
      %1164 = vmatpush2.msra.mxu0 0.0
      %1165 = vmatprep.subr.mxu0 0.0
      %1166 = vmatpush2.msra.mxu0 0.0
      %1167 = vmatprep.subr.mxu0 0.0
      %1168 = vmatpush2.msra.mxu0 0.0
      %1169 = vmatprep.subr.mxu0 0.0
      %1170 = vmatpush2.msra.mxu0 0.0
      %1171 = vmatprep.subr.mxu0 0.0
      %1172 = vmatpush2.msra.mxu0 0.0
      %1173 = vmatprep.subr.mxu0 0.0
      %1174 = vmatpush2.msra.mxu0 0.0
      %1175 = vmatprep.subr.mxu0 0.0
      %1176 = vmatpush2.msra.mxu0 0.0
      %1177 = vmatprep.subr.mxu0 0.0
      %1178 = vmatpush2.msra.mxu0 0.0
      %1179 = vmatprep.subr.mxu0 0.0
      %1180 = vmatpush2.msra.mxu0 0.0
      %1181 = vmatprep.subr.mxu0 0.0
      %1182 = vmatpush2.msra.mxu0 0.0
      %1183 = vmatprep.mubr.f32.mxu0 0.0
      %1184 = vmatmul.mubr.f32.gmra.mxu0 %v1117
      %v1185 = vpop.f32.mrf.mxu0
      %v1186 = vadd.f32 %v544, %v1185
      %v1187 = vpop.f32.mrf.mxu0
      %1188 = vdwg.mxu0
      %v1189 = vtanh.pop %v1186
      %v1190 = vadd.f32 %v483, %v1189
      %vm1191 = vcmask 28672
      %1192 = vst.msk [vmem:[%s482] sm:$0x1f] %vm1191, %v1190
      %v1194 = vsel %vm562, %v1190, 0
      %1196 = vmatprep.subr.mxu0 0.0
      %1197 = vmatpush1.msra.mxu0 0.0
      %1198 = vmatprep.subr.mxu0 0.0
      %1199 = vmatpush1.msra.mxu0 0.0
      %1200 = vmatprep.subr.mxu0 0.0
      %1201 = vmatpush1.msra.mxu0 0.0
      %1202 = vmatprep.subr.mxu0 0.0
      %1203 = vmatpush1.msra.mxu0 0.0
      %1204 = vmatprep.subr.mxu0 0.0
      %1205 = vmatpush1.msra.mxu0 0.0
      %1206 = vmatprep.subr.mxu0 0.0
      %1207 = vmatpush1.msra.mxu0 0.0
      %1208 = vmatprep.subr.mxu0 0.0
      %1209 = vmatpush1.msra.mxu0 0.0
      %1210 = vmatprep.subr.mxu0 0.0
      %1211 = vmatpush1.msra.mxu0 0.0
      %1212 = vmatprep.subr.mxu0 0.0
      %1213 = vmatpush1.msra.mxu0 0.0
      %1214 = vmatprep.subr.mxu0 0.0
      %1215 = vmatpush1.msra.mxu0 0.0
      %1216 = vmatprep.subr.mxu0 0.0
      %1217 = vmatpush1.msra.mxu0 0.0
      %1218 = vmatprep.subr.mxu0 0.0
      %1219 = vmatpush1.msra.mxu0 0.0
      %1220 = vmatprep.subr.mxu0 0.0
      %1221 = vmatpush1.msra.mxu0 0.0
      %1222 = vmatprep.subr.mxu0 0.0
      %1223 = vmatpush1.msra.mxu0 0.0
      %1224 = vmatprep.subr.mxu0 0.0
      %1225 = vmatpush1.msra.mxu0 0.0
      %1226 = vmatprep.subr.mxu0 0.0
      %1227 = vmatpush1.msra.mxu0 %v1194
      %1228 = vmatprep.subr.mxu0 0.0
      %1229 = vmatpush2.msra.mxu0 0.0
      %1230 = vmatprep.subr.mxu0 0.0
      %1231 = vmatpush2.msra.mxu0 0.0
      %1232 = vmatprep.subr.mxu0 0.0
      %1233 = vmatpush2.msra.mxu0 0.0
      %1234 = vmatprep.subr.mxu0 0.0
      %1235 = vmatpush2.msra.mxu0 0.0
      %1236 = vmatprep.subr.mxu0 0.0
      %1237 = vmatpush2.msra.mxu0 0.0
      %1238 = vmatprep.subr.mxu0 0.0
      %1239 = vmatpush2.msra.mxu0 0.0
      %1240 = vmatprep.subr.mxu0 0.0
      %1241 = vmatpush2.msra.mxu0 0.0
      %1242 = vmatprep.subr.mxu0 0.0
      %1243 = vmatpush2.msra.mxu0 0.0
      %1244 = vmatprep.subr.mxu0 0.0
      %1245 = vmatpush2.msra.mxu0 0.0
      %1246 = vmatprep.subr.mxu0 0.0
      %1247 = vmatpush2.msra.mxu0 0.0
      %1248 = vmatprep.subr.mxu0 0.0
      %1249 = vmatpush2.msra.mxu0 0.0
      %1250 = vmatprep.subr.mxu0 0.0
      %1251 = vmatpush2.msra.mxu0 0.0
      %1252 = vmatprep.subr.mxu0 0.0
      %1253 = vmatpush2.msra.mxu0 0.0
      %1254 = vmatprep.subr.mxu0 0.0
      %1255 = vmatpush2.msra.mxu0 0.0
      %1256 = vmatprep.subr.mxu0 0.0
      %1257 = vmatpush2.msra.mxu0 0.0
      %1258 = vmatprep.subr.mxu0 0.0
      %1259 = vmatpush2.msra.mxu0 0.0
      %1260 = vmatprep.mubr.f32.mxu0 0.0
      %1261 = vmatmul.mubr.f32.gmra.mxu0 %v548
      %v1262 = vpop.f32.mrf.mxu0
      %v1263 = vadd.f32 0.0, %v1262
      %v1264 = vpop.f32.mrf.mxu0
      %1265 = vmatprep.mubr.f32.mxu0 0.0
      %1266 = vmatmul.mubr.f32.gmra.mxu0 %v551
      %v1267 = vpop.f32.mrf.mxu0
      %v1268 = vadd.f32 0.0, %v1267
      %v1269 = vpop.f32.mrf.mxu0
      %1270 = vmatprep.mubr.f32.mxu0 0.0
      %1271 = vmatmul.mubr.f32.gmra.mxu0 %v554
      %v1272 = vpop.f32.mrf.mxu0
      %v1273 = vadd.f32 0.0, %v1272
      %v1274 = vpop.f32.mrf.mxu0
      %1275 = vmatprep.mubr.f32.mxu0 0.0
      %1276 = vmatmul.mubr.f32.gmra.mxu0 %v557
      %v1277 = vpop.f32.mrf.mxu0
      %v1278 = vadd.f32 0.0, %v1277
      %v1279 = vpop.f32.mrf.mxu0
      %1280 = vmatprep.mubr.f32.mxu0 0.0
      %1281 = vmatmul.mubr.f32.gmra.mxu0 %v560
      %v1282 = vpop.f32.mrf.mxu0
      %v1283 = vadd.f32 0.0, %v1282
      %v1284 = vpop.f32.mrf.mxu0
      %1285 = vdwg.mxu0
      %v1289 = vrot.slane %v1273, 4
      %v1290 = vrot.slane %v1278, 4
      %v1291 = vsel %vm659, %v1289, %v1290
      %v1292 = vrot.slane %v1283, 4
      %v1293 = vsel %vm659, %v1290, %v1292
      %1294 = vrot.lane.b32.xlu0 %v1291, 4
      %v1295 = vpop.permute.xlu0 %1294
      %1296 = vrot.lane.b32.xlu0 %v1293, 4
      %v1297 = vpop.permute.xlu0 %1296
      %1298 = vrot.lane.b32.xlu0 %v1292, 4
      %v1299 = vpop.permute.xlu0 %1298
      %v1303 = vsel %vm674, %v1263, %v1295
      %v1304 = vsel %vm674, %v1268, %v1297
      %v1305 = vsel %vm674, %v1273, %v1299
      %v1307 = vsel %vm678, %v1303, 0
      %v1310 = vsel %vm678, %v1304, 0
      %v1313 = vsel %vm678, %v1305, 0
      %1315 = vmatprep.subr.mxu0 0.0
      %1316 = vmatpush1.msra.mxu0 0.0
      %1317 = vmatprep.subr.mxu0 0.0
      %1318 = vmatpush1.msra.mxu0 0.0
      %1319 = vmatprep.subr.mxu0 0.0
      %1320 = vmatpush1.msra.mxu0 0.0
      %1321 = vmatprep.subr.mxu0 0.0
      %1322 = vmatpush1.msra.mxu0 0.0
      %1323 = vmatprep.subr.mxu0 0.0
      %1324 = vmatpush1.msra.mxu0 0.0
      %1325 = vmatprep.subr.mxu0 0.0
      %1326 = vmatpush1.msra.mxu0 0.0
      %1327 = vmatprep.subr.mxu0 0.0
      %1328 = vmatpush1.msra.mxu0 0.0
      %1329 = vmatprep.subr.mxu0 0.0
      %1330 = vmatpush1.msra.mxu0 0.0
      %1331 = vmatprep.subr.mxu0 0.0
      %1332 = vmatpush1.msra.mxu0 0.0
      %1333 = vmatprep.subr.mxu0 0.0
      %1334 = vmatpush1.msra.mxu0 0.0
      %1335 = vmatprep.subr.mxu0 0.0
      %1336 = vmatpush1.msra.mxu0 0.0
      %1337 = vmatprep.subr.mxu0 0.0
      %1338 = vmatpush1.msra.mxu0 0.0
      %1339 = vmatprep.subr.mxu0 0.0
      %1340 = vmatpush1.msra.mxu0 0.0
      %1341 = vmatprep.subr.mxu0 0.0
      %1342 = vmatpush1.msra.mxu0 0.0
      %1343 = vmatprep.subr.mxu0 0.0
      %1344 = vmatpush1.msra.mxu0 0.0
      %1345 = vmatprep.subr.mxu0 0.0
      %1346 = vmatpush1.msra.mxu0 %v493
      %1347 = vmatprep.subr.mxu0 0.0
      %1348 = vmatpush2.msra.mxu0 0.0
      %1349 = vmatprep.subr.mxu0 0.0
      %1350 = vmatpush2.msra.mxu0 0.0
      %1351 = vmatprep.subr.mxu0 0.0
      %1352 = vmatpush2.msra.mxu0 0.0
      %1353 = vmatprep.subr.mxu0 0.0
      %1354 = vmatpush2.msra.mxu0 0.0
      %1355 = vmatprep.subr.mxu0 0.0
      %1356 = vmatpush2.msra.mxu0 0.0
      %1357 = vmatprep.subr.mxu0 0.0
      %1358 = vmatpush2.msra.mxu0 0.0
      %1359 = vmatprep.subr.mxu0 0.0
      %1360 = vmatpush2.msra.mxu0 0.0
      %1361 = vmatprep.subr.mxu0 0.0
      %1362 = vmatpush2.msra.mxu0 0.0
      %1363 = vmatprep.subr.mxu0 0.0
      %1364 = vmatpush2.msra.mxu0 0.0
      %1365 = vmatprep.subr.mxu0 0.0
      %1366 = vmatpush2.msra.mxu0 0.0
      %1367 = vmatprep.subr.mxu0 0.0
      %1368 = vmatpush2.msra.mxu0 0.0
      %1369 = vmatprep.subr.mxu0 0.0
      %1370 = vmatpush2.msra.mxu0 0.0
      %1371 = vmatprep.subr.mxu0 0.0
      %1372 = vmatpush2.msra.mxu0 0.0
      %1373 = vmatprep.subr.mxu0 0.0
      %1374 = vmatpush2.msra.mxu0 0.0
      %1375 = vmatprep.subr.mxu0 0.0
      %1376 = vmatpush2.msra.mxu0 0.0
      %1377 = vmatprep.subr.mxu0 0.0
      %1378 = vmatpush2.msra.mxu0 0.0
      %1379 = vmatprep.mubr.f32.mxu0 0.0
      %1380 = vmatmul.mubr.f32.gmra.mxu0 %v1307
      %v1381 = vpop.f32.mrf.mxu0
      %v1382 = vadd.f32 %v516, %v1381
      %v1383 = vpop.f32.mrf.mxu0
      %1384 = vmatprep.mubr.f32.mxu0 0.0
      %1385 = vmatmul.mubr.f32.gmra.mxu0 %v1310
      %v1386 = vpop.f32.mrf.mxu0
      %v1387 = vadd.f32 %v516, %v1386
      %v1388 = vpop.f32.mrf.mxu0
      %1389 = vmatprep.mubr.f32.mxu0 0.0
      %1390 = vmatmul.mubr.f32.gmra.mxu0 %v1313
      %v1391 = vpop.f32.mrf.mxu0
      %v1392 = vadd.f32 %v516, %v1391
      %v1393 = vpop.f32.mrf.mxu0
      %1394 = vdwg.mxu0
      %v1395 = vmax.f32 %v1382, 0.0
      %v1396 = vmax.f32 %v1387, 0.0
      %v1397 = vmax.f32 %v1392, 0.0
      %v1399 = vsel %vm771, %v1395, 0
      %v1402 = vsel %vm771, %v1396, 0
      %v1405 = vsel %vm771, %v1397, 0
      %1407 = vmatprep.subr.mxu0 0.0
      %1408 = vmatpush1.msra.mxu0 0.0
      %1409 = vmatprep.subr.mxu0 0.0
      %1410 = vmatpush1.msra.mxu0 0.0
      %1411 = vmatprep.subr.mxu0 0.0
      %1412 = vmatpush1.msra.mxu0 0.0
      %1413 = vmatprep.subr.mxu0 0.0
      %1414 = vmatpush1.msra.mxu0 0.0
      %1415 = vmatprep.subr.mxu0 0.0
      %1416 = vmatpush1.msra.mxu0 0.0
      %1417 = vmatprep.subr.mxu0 0.0
      %1418 = vmatpush1.msra.mxu0 0.0
      %1419 = vmatprep.subr.mxu0 0.0
      %1420 = vmatpush1.msra.mxu0 0.0
      %1421 = vmatprep.subr.mxu0 0.0
      %1422 = vmatpush1.msra.mxu0 0.0
      %1423 = vmatprep.subr.mxu0 0.0
      %1424 = vmatpush1.msra.mxu0 0.0
      %1425 = vmatprep.subr.mxu0 0.0
      %1426 = vmatpush1.msra.mxu0 0.0
      %1427 = vmatprep.subr.mxu0 0.0
      %1428 = vmatpush1.msra.mxu0 0.0
      %1429 = vmatprep.subr.mxu0 0.0
      %1430 = vmatpush1.msra.mxu0 0.0
      %1431 = vmatprep.subr.mxu0 0.0
      %1432 = vmatpush1.msra.mxu0 %v497
      %1433 = vmatprep.subr.mxu0 0.0
      %1434 = vmatpush1.msra.mxu0 %v496
      %1435 = vmatprep.subr.mxu0 0.0
      %1436 = vmatpush1.msra.mxu0 %v495
      %1437 = vmatprep.subr.mxu0 0.0
      %1438 = vmatpush1.msra.mxu0 %v494
      %1439 = vmatprep.subr.mxu0 0.0
      %1440 = vmatpush2.msra.mxu0 0.0
      %1441 = vmatprep.subr.mxu0 0.0
      %1442 = vmatpush2.msra.mxu0 0.0
      %1443 = vmatprep.subr.mxu0 0.0
      %1444 = vmatpush2.msra.mxu0 0.0
      %1445 = vmatprep.subr.mxu0 0.0
      %1446 = vmatpush2.msra.mxu0 0.0
      %1447 = vmatprep.subr.mxu0 0.0
      %1448 = vmatpush2.msra.mxu0 0.0
      %1449 = vmatprep.subr.mxu0 0.0
      %1450 = vmatpush2.msra.mxu0 0.0
      %1451 = vmatprep.subr.mxu0 0.0
      %1452 = vmatpush2.msra.mxu0 0.0
      %1453 = vmatprep.subr.mxu0 0.0
      %1454 = vmatpush2.msra.mxu0 0.0
      %1455 = vmatprep.subr.mxu0 0.0
      %1456 = vmatpush2.msra.mxu0 0.0
      %1457 = vmatprep.subr.mxu0 0.0
      %1458 = vmatpush2.msra.mxu0 0.0
      %1459 = vmatprep.subr.mxu0 0.0
      %1460 = vmatpush2.msra.mxu0 0.0
      %1461 = vmatprep.subr.mxu0 0.0
      %1462 = vmatpush2.msra.mxu0 0.0
      %1463 = vmatprep.subr.mxu0 0.0
      %1464 = vmatpush2.msra.mxu0 0.0
      %1465 = vmatprep.subr.mxu0 0.0
      %1466 = vmatpush2.msra.mxu0 0.0
      %1467 = vmatprep.subr.mxu0 0.0
      %1468 = vmatpush2.msra.mxu0 0.0
      %1469 = vmatprep.subr.mxu0 0.0
      %1470 = vmatpush2.msra.mxu0 0.0
      %1471 = vmatprep.mubr.f32.mxu0 0.0
      %1472 = vmatmul.mubr.f32.gmra.mxu0 %v1399
      %v1473 = vpop.f32.mrf.mxu0
      %v1474 = vadd.f32 %v523, %v1473
      %v1475 = vpop.f32.mrf.mxu0
      %1476 = vmatprep.mubr.f32.mxu0 0.0
      %1477 = vmatmul.mubr.f32.gmra.mxu0 %v1402
      %v1478 = vpop.f32.mrf.mxu0
      %v1479 = vadd.f32 %v523, %v1478
      %v1480 = vpop.f32.mrf.mxu0
      %1481 = vmatprep.mubr.f32.mxu0 0.0
      %1482 = vmatmul.mubr.f32.gmra.mxu0 %v1405
      %v1483 = vpop.f32.mrf.mxu0
      %v1484 = vadd.f32 %v523, %v1483
      %v1485 = vpop.f32.mrf.mxu0
      %1486 = vdwg.mxu0
      %v1487 = vmax.f32 %v1474, 0.0
      %v1488 = vmax.f32 %v1479, 0.0
      %v1489 = vmax.f32 %v1484, 0.0
      %v1490 = vmul.f32 %v1487, %v867
      %v1491 = vmul.f32 %v1488, %v872
      %v1492 = vmul.f32 %v1489, %v877
      %v1494 = vsel %vm659, %v1492, 0
      %1496 = vmatprep.subr.mxu0 0.0
      %1497 = vmatpush1.msra.mxu0 0.0
      %1498 = vmatprep.subr.mxu0 0.0
      %1499 = vmatpush1.msra.mxu0 0.0
      %1500 = vmatprep.subr.mxu0 0.0
      %1501 = vmatpush1.msra.mxu0 0.0
      %1502 = vmatprep.subr.mxu0 0.0
      %1503 = vmatpush1.msra.mxu0 0.0
      %1504 = vmatprep.subr.mxu0 0.0
      %1505 = vmatpush1.msra.mxu0 0.0
      %1506 = vmatprep.subr.mxu0 0.0
      %1507 = vmatpush1.msra.mxu0 0.0
      %1508 = vmatprep.subr.mxu0 0.0
      %1509 = vmatpush1.msra.mxu0 0.0
      %1510 = vmatprep.subr.mxu0 0.0
      %1511 = vmatpush1.msra.mxu0 0.0
      %1512 = vmatprep.subr.mxu0 0.0
      %1513 = vmatpush1.msra.mxu0 0.0
      %1514 = vmatprep.subr.mxu0 0.0
      %1515 = vmatpush1.msra.mxu0 0.0
      %1516 = vmatprep.subr.mxu0 0.0
      %1517 = vmatpush1.msra.mxu0 0.0
      %1518 = vmatprep.subr.mxu0 0.0
      %1519 = vmatpush1.msra.mxu0 0.0
      %1520 = vmatprep.subr.mxu0 0.0
      %1521 = vmatpush1.msra.mxu0 0.0
      %1522 = vmatprep.subr.mxu0 0.0
      %1523 = vmatpush1.msra.mxu0 %v1494
      %1524 = vmatprep.subr.mxu0 0.0
      %1525 = vmatpush1.msra.mxu0 %v1491
      %1526 = vmatprep.subr.mxu0 0.0
      %1527 = vmatpush1.msra.mxu0 %v1490
      %1528 = vmatprep.subr.mxu0 0.0
      %1529 = vmatpush2.msra.mxu0 0.0
      %1530 = vmatprep.subr.mxu0 0.0
      %1531 = vmatpush2.msra.mxu0 0.0
      %1532 = vmatprep.subr.mxu0 0.0
      %1533 = vmatpush2.msra.mxu0 0.0
      %1534 = vmatprep.subr.mxu0 0.0
      %1535 = vmatpush2.msra.mxu0 0.0
      %1536 = vmatprep.subr.mxu0 0.0
      %1537 = vmatpush2.msra.mxu0 0.0
      %1538 = vmatprep.subr.mxu0 0.0
      %1539 = vmatpush2.msra.mxu0 0.0
      %1540 = vmatprep.subr.mxu0 0.0
      %1541 = vmatpush2.msra.mxu0 0.0
      %1542 = vmatprep.subr.mxu0 0.0
      %1543 = vmatpush2.msra.mxu0 0.0
      %1544 = vmatprep.subr.mxu0 0.0
      %1545 = vmatpush2.msra.mxu0 0.0
      %1546 = vmatprep.subr.mxu0 0.0
      %1547 = vmatpush2.msra.mxu0 0.0
      %1548 = vmatprep.subr.mxu0 0.0
      %1549 = vmatpush2.msra.mxu0 0.0
      %1550 = vmatprep.subr.mxu0 0.0
      %1551 = vmatpush2.msra.mxu0 0.0
      %1552 = vmatprep.subr.mxu0 0.0
      %1553 = vmatpush2.msra.mxu0 0.0
      %1554 = vmatprep.subr.mxu0 0.0
      %1555 = vmatpush2.msra.mxu0 0.0
      %1556 = vmatprep.subr.mxu0 0.0
      %1557 = vmatpush2.msra.mxu0 0.0
      %1558 = vmatprep.subr.mxu0 0.0
      %1559 = vmatpush2.msra.mxu0 0.0
      %1560 = vmatprep.mubr.f32.mxu0 0.0
      %1561 = vmatmul.mubr.f32.gmra.mxu0 %v884
      %v1562 = vpop.f32.mrf.mxu0
      %v1563 = vadd.f32 0.0, %v1562
      %v1564 = vpop.f32.mrf.mxu0
      %1565 = vdwg.mxu0
      %1567 = vrot.lane.b32.xlu0 %v1563, 4
      %v1568 = vpop.permute.xlu0 %1567
      %v1570 = vsel %vm674, %v1190, %v1568
      %v1572 = vsel %vm964, %v1570, 0
      %1574 = vmatprep.subr.mxu0 0.0
      %1575 = vmatpush1.msra.mxu0 0.0
      %1576 = vmatprep.subr.mxu0 0.0
      %1577 = vmatpush1.msra.mxu0 0.0
      %1578 = vmatprep.subr.mxu0 0.0
      %1579 = vmatpush1.msra.mxu0 0.0
      %1580 = vmatprep.subr.mxu0 0.0
      %1581 = vmatpush1.msra.mxu0 0.0
      %1582 = vmatprep.subr.mxu0 0.0
      %1583 = vmatpush1.msra.mxu0 0.0
      %1584 = vmatprep.subr.mxu0 0.0
      %1585 = vmatpush1.msra.mxu0 0.0
      %1586 = vmatprep.subr.mxu0 0.0
      %1587 = vmatpush1.msra.mxu0 0.0
      %1588 = vmatprep.subr.mxu0 0.0
      %1589 = vmatpush1.msra.mxu0 0.0
      %1590 = vmatprep.subr.mxu0 0.0
      %1591 = vmatpush1.msra.mxu0 0.0
      %1592 = vmatprep.subr.mxu0 0.0
      %1593 = vmatpush1.msra.mxu0 0.0
      %1594 = vmatprep.subr.mxu0 0.0
      %1595 = vmatpush1.msra.mxu0 0.0
      %1596 = vmatprep.subr.mxu0 0.0
      %1597 = vmatpush1.msra.mxu0 %v969
      %1598 = vmatprep.subr.mxu0 0.0
      %1599 = vmatpush1.msra.mxu0 %v501
      %1600 = vmatprep.subr.mxu0 0.0
      %1601 = vmatpush1.msra.mxu0 %v500
      %1602 = vmatprep.subr.mxu0 0.0
      %1603 = vmatpush1.msra.mxu0 %v499
      %1604 = vmatprep.subr.mxu0 0.0
      %1605 = vmatpush1.msra.mxu0 %v498
      %1606 = vmatprep.subr.mxu0 0.0
      %1607 = vmatpush2.msra.mxu0 0.0
      %1608 = vmatprep.subr.mxu0 0.0
      %1609 = vmatpush2.msra.mxu0 0.0
      %1610 = vmatprep.subr.mxu0 0.0
      %1611 = vmatpush2.msra.mxu0 0.0
      %1612 = vmatprep.subr.mxu0 0.0
      %1613 = vmatpush2.msra.mxu0 0.0
      %1614 = vmatprep.subr.mxu0 0.0
      %1615 = vmatpush2.msra.mxu0 0.0
      %1616 = vmatprep.subr.mxu0 0.0
      %1617 = vmatpush2.msra.mxu0 0.0
      %1618 = vmatprep.subr.mxu0 0.0
      %1619 = vmatpush2.msra.mxu0 0.0
      %1620 = vmatprep.subr.mxu0 0.0
      %1621 = vmatpush2.msra.mxu0 0.0
      %1622 = vmatprep.subr.mxu0 0.0
      %1623 = vmatpush2.msra.mxu0 0.0
      %1624 = vmatprep.subr.mxu0 0.0
      %1625 = vmatpush2.msra.mxu0 0.0
      %1626 = vmatprep.subr.mxu0 0.0
      %1627 = vmatpush2.msra.mxu0 0.0
      %1628 = vmatprep.subr.mxu0 0.0
      %1629 = vmatpush2.msra.mxu0 0.0
      %1630 = vmatprep.subr.mxu0 0.0
      %1631 = vmatpush2.msra.mxu0 0.0
      %1632 = vmatprep.subr.mxu0 0.0
      %1633 = vmatpush2.msra.mxu0 0.0
      %1634 = vmatprep.subr.mxu0 0.0
      %1635 = vmatpush2.msra.mxu0 0.0
      %1636 = vmatprep.subr.mxu0 0.0
      %1637 = vmatpush2.msra.mxu0 0.0
      %1638 = vmatprep.mubr.f32.mxu0 0.0
      %1639 = vmatmul.mubr.f32.gmra.mxu0 %v1572
      %v1640 = vpop.f32.mrf.mxu0
      %v1641 = vadd.f32 %v530, %v1640
      %v1642 = vpop.f32.mrf.mxu0
      %1643 = vdwg.mxu0
      %v1644 = vmax.f32 %v1641, 0.0
      %v1646 = vsel %vm771, %v1644, 0
      %1648 = vmatprep.subr.mxu0 0.0
      %1649 = vmatpush1.msra.mxu0 0.0
      %1650 = vmatprep.subr.mxu0 0.0
      %1651 = vmatpush1.msra.mxu0 0.0
      %1652 = vmatprep.subr.mxu0 0.0
      %1653 = vmatpush1.msra.mxu0 0.0
      %1654 = vmatprep.subr.mxu0 0.0
      %1655 = vmatpush1.msra.mxu0 0.0
      %1656 = vmatprep.subr.mxu0 0.0
      %1657 = vmatpush1.msra.mxu0 0.0
      %1658 = vmatprep.subr.mxu0 0.0
      %1659 = vmatpush1.msra.mxu0 0.0
      %1660 = vmatprep.subr.mxu0 0.0
      %1661 = vmatpush1.msra.mxu0 0.0
      %1662 = vmatprep.subr.mxu0 0.0
      %1663 = vmatpush1.msra.mxu0 0.0
      %1664 = vmatprep.subr.mxu0 0.0
      %1665 = vmatpush1.msra.mxu0 0.0
      %1666 = vmatprep.subr.mxu0 0.0
      %1667 = vmatpush1.msra.mxu0 0.0
      %1668 = vmatprep.subr.mxu0 0.0
      %1669 = vmatpush1.msra.mxu0 0.0
      %1670 = vmatprep.subr.mxu0 0.0
      %1671 = vmatpush1.msra.mxu0 0.0
      %1672 = vmatprep.subr.mxu0 0.0
      %1673 = vmatpush1.msra.mxu0 %v506
      %1674 = vmatprep.subr.mxu0 0.0
      %1675 = vmatpush1.msra.mxu0 %v505
      %1676 = vmatprep.subr.mxu0 0.0
      %1677 = vmatpush1.msra.mxu0 %v504
      %1678 = vmatprep.subr.mxu0 0.0
      %1679 = vmatpush1.msra.mxu0 %v503
      %1680 = vmatprep.subr.mxu0 0.0
      %1681 = vmatpush2.msra.mxu0 0.0
      %1682 = vmatprep.subr.mxu0 0.0
      %1683 = vmatpush2.msra.mxu0 0.0
      %1684 = vmatprep.subr.mxu0 0.0
      %1685 = vmatpush2.msra.mxu0 0.0
      %1686 = vmatprep.subr.mxu0 0.0
      %1687 = vmatpush2.msra.mxu0 0.0
      %1688 = vmatprep.subr.mxu0 0.0
      %1689 = vmatpush2.msra.mxu0 0.0
      %1690 = vmatprep.subr.mxu0 0.0
      %1691 = vmatpush2.msra.mxu0 0.0
      %1692 = vmatprep.subr.mxu0 0.0
      %1693 = vmatpush2.msra.mxu0 0.0
      %1694 = vmatprep.subr.mxu0 0.0
      %1695 = vmatpush2.msra.mxu0 0.0
      %1696 = vmatprep.subr.mxu0 0.0
      %1697 = vmatpush2.msra.mxu0 0.0
      %1698 = vmatprep.subr.mxu0 0.0
      %1699 = vmatpush2.msra.mxu0 0.0
      %1700 = vmatprep.subr.mxu0 0.0
      %1701 = vmatpush2.msra.mxu0 0.0
      %1702 = vmatprep.subr.mxu0 0.0
      %1703 = vmatpush2.msra.mxu0 0.0
      %1704 = vmatprep.subr.mxu0 0.0
      %1705 = vmatpush2.msra.mxu0 0.0
      %1706 = vmatprep.subr.mxu0 0.0
      %1707 = vmatpush2.msra.mxu0 0.0
      %1708 = vmatprep.subr.mxu0 0.0
      %1709 = vmatpush2.msra.mxu0 0.0
      %1710 = vmatprep.subr.mxu0 0.0
      %1711 = vmatpush2.msra.mxu0 0.0
      %1712 = vmatprep.mubr.f32.mxu0 0.0
      %1713 = vmatmul.mubr.f32.gmra.mxu0 %v1646
      %v1714 = vpop.f32.mrf.mxu0
      %v1715 = vadd.f32 %v537, %v1714
      %v1716 = vpop.f32.mrf.mxu0
      %1717 = vdwg.mxu0
      %v1718 = vmax.f32 %v1715, 0.0
      %v1720 = vsel %vm771, %v1718, 0
      %1722 = vmatprep.subr.mxu0 0.0
      %1723 = vmatpush1.msra.mxu0 0.0
      %1724 = vmatprep.subr.mxu0 0.0
      %1725 = vmatpush1.msra.mxu0 0.0
      %1726 = vmatprep.subr.mxu0 0.0
      %1727 = vmatpush1.msra.mxu0 0.0
      %1728 = vmatprep.subr.mxu0 0.0
      %1729 = vmatpush1.msra.mxu0 0.0
      %1730 = vmatprep.subr.mxu0 0.0
      %1731 = vmatpush1.msra.mxu0 0.0
      %1732 = vmatprep.subr.mxu0 0.0
      %1733 = vmatpush1.msra.mxu0 0.0
      %1734 = vmatprep.subr.mxu0 0.0
      %1735 = vmatpush1.msra.mxu0 0.0
      %1736 = vmatprep.subr.mxu0 0.0
      %1737 = vmatpush1.msra.mxu0 0.0
      %1738 = vmatprep.subr.mxu0 0.0
      %1739 = vmatpush1.msra.mxu0 0.0
      %1740 = vmatprep.subr.mxu0 0.0
      %1741 = vmatpush1.msra.mxu0 0.0
      %1742 = vmatprep.subr.mxu0 0.0
      %1743 = vmatpush1.msra.mxu0 0.0
      %1744 = vmatprep.subr.mxu0 0.0
      %1745 = vmatpush1.msra.mxu0 0.0
      %1746 = vmatprep.subr.mxu0 0.0
      %1747 = vmatpush1.msra.mxu0 %v510
      %1748 = vmatprep.subr.mxu0 0.0
      %1749 = vmatpush1.msra.mxu0 %v509
      %1750 = vmatprep.subr.mxu0 0.0
      %1751 = vmatpush1.msra.mxu0 %v508
      %1752 = vmatprep.subr.mxu0 0.0
      %1753 = vmatpush1.msra.mxu0 %v507
      %1754 = vmatprep.subr.mxu0 0.0
      %1755 = vmatpush2.msra.mxu0 0.0
      %1756 = vmatprep.subr.mxu0 0.0
      %1757 = vmatpush2.msra.mxu0 0.0
      %1758 = vmatprep.subr.mxu0 0.0
      %1759 = vmatpush2.msra.mxu0 0.0
      %1760 = vmatprep.subr.mxu0 0.0
      %1761 = vmatpush2.msra.mxu0 0.0
      %1762 = vmatprep.subr.mxu0 0.0
      %1763 = vmatpush2.msra.mxu0 0.0
      %1764 = vmatprep.subr.mxu0 0.0
      %1765 = vmatpush2.msra.mxu0 0.0
      %1766 = vmatprep.subr.mxu0 0.0
      %1767 = vmatpush2.msra.mxu0 0.0
      %1768 = vmatprep.subr.mxu0 0.0
      %1769 = vmatpush2.msra.mxu0 0.0
      %1770 = vmatprep.subr.mxu0 0.0
      %1771 = vmatpush2.msra.mxu0 0.0
      %1772 = vmatprep.subr.mxu0 0.0
      %1773 = vmatpush2.msra.mxu0 0.0
      %1774 = vmatprep.subr.mxu0 0.0
      %1775 = vmatpush2.msra.mxu0 0.0
      %1776 = vmatprep.subr.mxu0 0.0
      %1777 = vmatpush2.msra.mxu0 0.0
      %1778 = vmatprep.subr.mxu0 0.0
      %1779 = vmatpush2.msra.mxu0 0.0
      %1780 = vmatprep.subr.mxu0 0.0
      %1781 = vmatpush2.msra.mxu0 0.0
      %1782 = vmatprep.subr.mxu0 0.0
      %1783 = vmatpush2.msra.mxu0 0.0
      %1784 = vmatprep.subr.mxu0 0.0
      %1785 = vmatpush2.msra.mxu0 0.0
      %1786 = vmatprep.mubr.f32.mxu0 0.0
      %1787 = vmatmul.mubr.f32.gmra.mxu0 %v1720
      %v1788 = vpop.f32.mrf.mxu0
      %v1789 = vadd.f32 %v544, %v1788
      %v1790 = vpop.f32.mrf.mxu0
      %1791 = vdwg.mxu0
      %v1792 = vtanh.pop %v1789
      %v1793 = vadd.f32 %v1190, %v1792
      %1795 = vrot.lane.b32.xlu0 %v1793, 4
      %v1796 = vpop.permute.xlu0 %1795
      %vm1798 = vcmask 61472
      %1799 = vst.msk [vmem:[%s482] sm:$0x1f] %vm1798, %v1796
      %p1800 = scmp.lt.s32.totalorder %s25, 1
      %s1801 = scalar_select %p1800, %s25, 1
      %s1802 = smul.addr %s1801, 8
      %s1803 = scalar_lea.vmem %s14, %s1802
      // Predicated region
      $region77: #{tpu_custom_call.1} parent=75 // pred_check
        %p1804 = pneg %p347
      $region78: #{tpu_custom_call.1} parent=75 // pred_check_branch
        %1806 = sbr.rel (%p1804) target = $region80
      $region79: #{tpu_custom_call.1} parent=75 // pred_region
        _
      $region80: #{tpu_custom_call.1} parent=75 // pred_fallthru
        _
    $region76: #{tpu_custom_call.1} parent=5 // pred_fallthru
      _
    %p1807 = scmp.le.s32.totalorder 2, %s20
    // Predicated region
    $region81: #{tpu_custom_call.1} parent=5 // pred_check
      %p1808 = pneg %p1807
    $region82: #{tpu_custom_call.1} parent=5 // pred_check_branch
      %1810 = sbr.rel (%p1808) target = $region84
    $region83: #{tpu_custom_call.1} parent=5 // pred_region
      %s1811 = ssub.s32 %s20, 2
      // Predicated region
      $region85: #{tpu_custom_call.1} parent=83 // pred_check
        %p1812 = pneg %p353
      $region86: #{tpu_custom_call.1} parent=83 // pred_check_branch
        %1814 = sbr.rel (%p1812) target = $region88
      $region87: #{tpu_custom_call.1} parent=83 // pred_region
        %p1815 = scmp.lt.s32.totalorder %s26, 1
        %s1816 = scalar_select %p1815, %s26, 1
        %s1817 = smul.addr %s1816, 8
        %s1818 = scalar_lea.vmem %s14, %s1817
      $region88: #{tpu_custom_call.1} parent=83 // pred_fallthru
        _
    $region84: #{tpu_custom_call.1} parent=5 // pred_fallthru
      _
  $region6: #{tpu_custom_call.1} parent=0 // loop_footer
    %s24 = sadd.s32 1, %s20
  $region7: #{tpu_custom_call.1} parent=0 // loop_footer_branch
    %19 = sbr.rel target = $region3
  $region8: #{tpu_custom_call.1} parent=0 // loop_exit
    _

</llo_original>
